<compile_context>
chip_gen: v7x
topology: tpu7x:2x2x1
jax: 0.10.0
libtpu: 0.0.40
codegen_flags: <defaults>
</compile_context>

<pallas_src>
import math
from functools import partial

import jax
import jax.numpy as jnp
from jax.experimental import pallas as pl
from jax.experimental.pallas import tpu as pltpu

HIDDEN_DIM = 768      # patch-feature dim (columns 2: of x_path entries)
DIM = 512             # model dim
NUM_HEADS = 8
HEAD_DIM = DIM // NUM_HEADS
ATTN_DIM = 256        # Attn_Net hidden dim D
LN_EPS = 1e-5
MATMUL_DTYPE = jnp.bfloat16   # MXU operand dtype (f32 accumulation everywhere)

ROW_TILE = 512        # row tile for the pointwise / MLP kernels
POOL_TILE = 512       # row tile for the attention-pool head
NEG_INF = -1e30

_PAR = pltpu.CompilerParams(dimension_semantics=("parallel",))
_ARB = pltpu.CompilerParams(dimension_semantics=("arbitrary",))


def _pick_window_batch():
    # M = WB*ws rows per grid step: 16 windows (M=256 at ws=16) matches the
    # 256x256 MXU of v6e/v7x; 8 (M=128) matches v5e's 128x128 MXU.
    try:
        kind = jax.devices()[0].device_kind.lower()
        if "v6" in kind or "v7" in kind:
            return 16
    except Exception:
        pass
    return 8


_WINDOW_BATCH = _pick_window_batch()


def _layernorm(x, gamma, beta):
    mu = jnp.mean(x, axis=-1, keepdims=True)
    var = jnp.mean((x - mu) ** 2, axis=-1, keepdims=True)
    return (x - mu) * jax.lax.rsqrt(var + LN_EPS) * gamma + beta


def _gelu_tanh(x):
    # TODO(synk): nn.GELU() default is the exact erf form; erf has no guaranteed
    # Mosaic lowering, so the tanh approximation is used in-kernel (<=~1e-3 abs diff).
    c = math.sqrt(2.0 / math.pi)
    return 0.5 * x * (1.0 + jnp.tanh(c * (x + 0.044715 * x * x * x)))


def _piecewise_index(rp, shift):
    # In-kernel float version of HVTSurv's piecewise_index (coords are
    # integer-valued so sign(round(rp)) == sign(rp)); floor(x+0.5) ~ round for
    # the (always non-negative) log branch.
    alpha = 1.9
    beta = 1.9 * 4.0
    gamma = 1.9 * 6.0
    rp_abs = jnp.abs(rp)
    near = rp_abs <= 2.0 * alpha
    safe = jnp.where(near, alpha, rp_abs)                 # avoid log(0)
    val = jnp.log(safe * (1.0 / alpha)) * ((beta - 2.0 * alpha) / math.log(gamma / alpha))
    far_idx = jnp.minimum(jnp.floor(val + 0.5), float(shift))
    sgn = jnp.where(rp > 0.0, 1.0, jnp.where(rp < 0.0, -1.0, 0.0))
    return jnp.where(near, sgn, sgn * far_idx)


def _row_tile(n, tile):
    return tile if n >= tile else n


# -----------------------------------------------------------------------------
# Kernel 1: _fc1 = Linear(768 -> 512) + ReLU   (row-tiled, ragged last block)
# -----------------------------------------------------------------------------
def _linear_relu_kernel(x_ref, w_ref, b_ref, o_ref):
    y = jnp.dot(x_ref[...], w_ref[...], preferred_element_type=jnp.float32) + b_ref[...]
    o_ref[...] = jnp.maximum(y, 0.0)


def linear_relu(x, w, b):
    # x is bf16 (cast in the caller) -> half the HBM read of this mem-bound kernel
    n, din = x.shape
    dout = w.shape[1]
    tm = _row_tile(n, ROW_TILE)
    return pl.pallas_call(
        _linear_relu_kernel,
        out_shape=jax.ShapeDtypeStruct((n, dout), jnp.float32),
        grid=(pl.cdiv(n, tm),),
        in_specs=[pl.BlockSpec((tm, din), lambda i: (i, 0)),
                  pl.BlockSpec((din, dout), lambda i: (0, 0)),
                  pl.BlockSpec((1, dout), lambda i: (0, 0))],
        out_specs=pl.BlockSpec((tm, dout), lambda i: (i, 0)),
        compiler_params=_PAR,
    )(x, w, b)


# -----------------------------------------------------------------------------
# Kernel 2: fused  LayerNorm -> windowed 8-head attention -> proj -> residual
#           (-> optional GELU).  One grid step processes WB windows as a single
#           M = WB*ws row block; per head the score/AV matmuls are full-width
#           (M,64)x(64,M) / (M,M)x(M,64) with a block-diagonal same-window mask,
#           so softmax is lane-dense and the MXU sees big pushes.
# -----------------------------------------------------------------------------
def _attn_core(x, same, bias_for_head, gamma, beta, wqkv, bqkv, wproj, bproj,
               attn_sc, scale, apply_gelu):
    m = x.shape[0]
    xn = _layernorm(x, gamma, beta)
    qkv = jnp.dot(xn.astype(MATMUL_DTYPE), wqkv,
                  preferred_element_type=jnp.float32) + bqkv            # (M, 1536)

    for h in range(NUM_HEADS):
        lo = h * HEAD_DIM
        q = qkv[:, lo:lo + HEAD_DIM].astype(MATMUL_DTYPE)
        k = qkv[:, DIM + lo:DIM + lo + HEAD_DIM].astype(MATMUL_DTYPE)
        v = qkv[:, 2 * DIM + lo:2 * DIM + lo + HEAD_DIM].astype(MATMUL_DTYPE)
        # full-width NT score matmul over the whole M-row block
        s = jax.lax.dot_general(q, k, (((1,), (1,)), ((), ())),
                                preferred_element_type=jnp.float32) * scale
        if bias_for_head is not None:
            s = s + bias_for_head(h)
        s = jnp.where(same, s, NEG_INF)                 # block-diagonal window mask
        s = s - jnp.max(s, axis=-1, keepdims=True)
        p = jnp.exp(s)
        p = p * (1.0 / jnp.sum(p, axis=-1, keepdims=True))
        # write head output straight into the (M, DIM) VMEM slab (no concat)
        attn_sc[:, lo:lo + HEAD_DIM] = jnp.dot(p.astype(MATMUL_DTYPE), v,
                                               preferred_element_type=jnp.float32)

    y = jnp.dot(attn_sc[...].astype(MATMUL_DTYPE), wproj,
                preferred_element_type=jnp.float32) + bproj
    y = x + y                                                           # residual
    if apply_gelu:
        y = _gelu_tanh(y)                                               # LocalLayer act
    return y


def _local_attn_kernel(x_ref, cxr_ref, cyr_ref, cxc_ref, cyc_ref,
                       widr_ref, widc_ref, table_ref,
                       g_ref, b_ref, wqkv_ref, bqkv_ref, wproj_ref, bproj_ref,
                       o_ref, attn_sc, *, wb, ws, shift, scale):
    m = wb * ws
    x = x_ref[...].reshape(m, DIM)                       # rows r = w*ws + i (contiguous windows)
    same = widc_ref[...] == widr_ref[...]                # (M, M) block-diagonal mask

    # relative-position index, lane-dense (M, M); only within-window entries are used
    cx_row = cxr_ref[...].reshape(1, m)
    cy_row = cyr_ref[...].reshape(1, m)
    cx_col = cxc_ref[...].reshape(m, 1)
    cy_col = cyc_ref[...].reshape(m, 1)
    ridx = (jnp.abs(_piecewise_index(cx_col - cx_row, shift)) +
            jnp.abs(_piecewise_index(cy_col - cy_row, shift)))          # exact small ints

    def bias_for_head(h):
        # select-sum gather from the tiny (2*shift+1, H) table held in SMEM
        bias = jnp.zeros((m, m), jnp.float32)
        for t in range(2 * shift + 1):
            bias = bias + jnp.where(ridx == float(t), table_ref[t, h], 0.0)
        return bias

    y = _attn_core(x, same, bias_for_head,
                   g_ref[...], b_ref[...], wqkv_ref[...], bqkv_ref[...],
                   wproj_ref[...], bproj_ref[...], attn_sc, scale, apply_gelu=True)
    o_ref[...] = y.reshape(wb, ws, DIM)


def _shuffle_attn_kernel(x_ref, widr_ref, widc_ref,
                         g_ref, b_ref, wqkv_ref, bqkv_ref, wproj_ref, bproj_ref,
                         o_ref, attn_sc, *, wb, ws, scale):
    m = ws * wb
    x = x_ref[...].reshape(m, DIM)                       # rows r = i*wb + w (interleaved windows)
    same = widc_ref[...] == widr_ref[...]                # window id = r % wb
    y = _attn_core(x, same, None,
                   g_ref[...], b_ref[...], wqkv_ref[...], bqkv_ref[...],
                   wproj_ref[...], bproj_ref[...], attn_sc, scale, apply_gelu=False)
    o_ref[...] = y.reshape(ws, wb, DIM)


def _window_batch(nw):
    # keep WB a multiple of 8 so the in-kernel (wb, ws, DIM) <-> (M, DIM)
    # reshapes stay sublane-aligned
    return _WINDOW_BATCH if nw >= _WINDOW_BATCH else ((nw + 7) // 8) * 8


def local_window_attention(xw, coords, table, shift, ln_g, ln_b,
                           wqkv, bqkv, wproj, bproj):
    nw, ws, _ = xw.shape
    wb = _window_batch(nw)
    nw_pad = ((nw + wb - 1) // wb) * wb
    if nw_pad != nw:
        # TODO(synk): zero-pad of the window axis costs one activation copy when
        # nw % wb != 0; kept for NaN-safety of the padded rows.
        xw = jnp.pad(xw, ((0, nw_pad - nw), (0, 0), (0, 0)))
        coords = jnp.pad(coords, ((0, (nw_pad - nw) * ws), (0, 0)))
    n_steps = nw_pad // wb
    m = wb * ws
    cx = coords[:, 0]
    cy = coords[:, 1]
    cx_row = cx.reshape(n_steps, 1, m)
    cy_row = cy.reshape(n_steps, 1, m)
    cx_col = cx.reshape(n_steps, m, 1)
    cy_col = cy.reshape(n_steps, m, 1)
    wid = jnp.repeat(jnp.arange(wb, dtype=jnp.int32), ws)       # row r = w*ws+i -> w
    wid_row = wid.reshape(1, m)
    wid_col = wid.reshape(m, 1)
    scale = HEAD_DIM ** -0.5

    out = pl.pallas_call(
        partial(_local_attn_kernel, wb=wb, ws=ws, shift=shift, scale=scale),
        out_shape=jax.ShapeDtypeStruct((nw_pad, ws, DIM), jnp.float32),
        grid=(n_steps,),
        in_specs=[
            pl.BlockSpec((wb, ws, DIM), lambda s: (s, 0, 0)),
            pl.BlockSpec((1, 1, m), lambda s: (s, 0, 0)),
            pl.BlockSpec((1, 1, m), lambda s: (s, 0, 0)),
            pl.BlockSpec((1, m, 1), lambda s: (s, 0, 0)),
            pl.BlockSpec((1, m, 1), lambda s: (s, 0, 0)),
            pl.BlockSpec((1, m), lambda s: (0, 0)),
            pl.BlockSpec((m, 1), lambda s: (0, 0)),
            pl.BlockSpec(memory_space=pltpu.MemorySpace.SMEM),   # rel-pos bias table
            pl.BlockSpec((1, DIM), lambda s: (0, 0)),
            pl.BlockSpec((1, DIM), lambda s: (0, 0)),
            pl.BlockSpec((DIM, 3 * DIM), lambda s: (0, 0)),
            pl.BlockSpec((1, 3 * DIM), lambda s: (0, 0)),
            pl.BlockSpec((DIM, DIM), lambda s: (0, 0)),
            pl.BlockSpec((1, DIM), lambda s: (0, 0)),
        ],
        out_specs=pl.BlockSpec((wb, ws, DIM), lambda s: (s, 0, 0)),
        scratch_shapes=[pltpu.VMEM((m, DIM), jnp.float32)],
        compiler_params=_PAR,
    )(xw, cx_row, cy_row, cx_col, cy_col, wid_row, wid_col, table,
      ln_g, ln_b, wqkv, bqkv, wproj, bproj)
    return out[:nw] if nw_pad != nw else out


def shuffle_window_attention(x, ln_g, ln_b, wqkv, bqkv, wproj, bproj):
    # x: (ws, nw, DIM) view of the token stream; shuffled window w = x[:, w, :]
    ws, nw, _ = x.shape
    wb = _window_batch(nw)
    nw_pad = ((nw + wb - 1) // wb) * wb
    if nw_pad != nw:
        x = jnp.pad(x, ((0, 0), (0, nw_pad - nw), (0, 0)))
    n_steps = nw_pad // wb
    m = ws * wb
    wid = jnp.tile(jnp.arange(wb, dtype=jnp.int32), ws)         # row r = i*wb+w -> w
    wid_row = wid.reshape(1, m)
    wid_col = wid.reshape(m, 1)
    scale = HEAD_DIM ** -0.5

    out = pl.pallas_call(
        partial(_shuffle_attn_kernel, wb=wb, ws=ws, scale=scale),
        out_shape=jax.ShapeDtypeStruct((ws, nw_pad, DIM), jnp.float32),
        grid=(n_steps,),
        in_specs=[
            pl.BlockSpec((ws, wb, DIM), lambda s: (0, s, 0)),
            pl.BlockSpec((1, m), lambda s: (0, 0)),
            pl.BlockSpec((m, 1), lambda s: (0, 0)),
            pl.BlockSpec((1, DIM), lambda s: (0, 0)),
            pl.BlockSpec((1, DIM), lambda s: (0, 0)),
            pl.BlockSpec((DIM, 3 * DIM), lambda s: (0, 0)),
            pl.BlockSpec((1, 3 * DIM), lambda s: (0, 0)),
            pl.BlockSpec((DIM, DIM), lambda s: (0, 0)),
            pl.BlockSpec((1, DIM), lambda s: (0, 0)),
        ],
        out_specs=pl.BlockSpec((ws, wb, DIM), lambda s: (0, s, 0)),
        scratch_shapes=[pltpu.VMEM((m, DIM), jnp.float32)],
        compiler_params=_PAR,
    )(x, wid_row, wid_col, ln_g, ln_b, wqkv, bqkv, wproj, bproj)
    if nw_pad != nw:
        out = out[:, :nw, :]
    return out


# -----------------------------------------------------------------------------
# Kernel 3: fused MLP block:  LN(norm2) -> fc1 -> GELU -> fc2 -> residual
# -----------------------------------------------------------------------------
def _mlp_kernel(x_ref, g_ref, be_ref, w1_ref, b1_ref, w2_ref, b2_ref, o_ref):
    x = x_ref[...]
    xn = _layernorm(x, g_ref[...], be_ref[...])
    h = jnp.dot(xn.astype(MATMUL_DTYPE), w1_ref[...],
                preferred_element_type=jnp.float32) + b1_ref[...]
    h = _gelu_tanh(h)
    y = jnp.dot(h.astype(MATMUL_DTYPE), w2_ref[...],
                preferred_element_type=jnp.float32) + b2_ref[...]
    o_ref[...] = x + y


def fused_mlp(x, g, be, w1, b1, w2, b2):
    n, d = x.shape
    dh = w1.shape[1]
    tm = _row_tile(n, ROW_TILE)
    return pl.pallas_call(
        _mlp_kernel,
        out_shape=jax.ShapeDtypeStruct((n, d), jnp.float32),
        grid=(pl.cdiv(n, tm),),
        in_specs=[pl.BlockSpec((tm, d), lambda i: (i, 0)),
                  pl.BlockSpec((1, d), lambda i: (0, 0)),
                  pl.BlockSpec((1, d), lambda i: (0, 0)),
                  pl.BlockSpec((d, dh), lambda i: (0, 0)),
                  pl.BlockSpec((1, dh), lambda i: (0, 0)),
                  pl.BlockSpec((dh, d), lambda i: (0, 0)),
                  pl.BlockSpec((1, d), lambda i: (0, 0))],
        out_specs=pl.BlockSpec((tm, d), lambda i: (i, 0)),
        compiler_params=_PAR,
    )(x, g, be, w1, b1, w2, b2)


# -----------------------------------------------------------------------------
# Kernel 4: norm3 -> Attn_Net (tanh gated scores) -> softmax over tokens ->
#           attention-pooled feature -> _fc2 logits.   Row-tiled with (8,·)
#           sublane-partial online-softmax accumulators; the row-validity mask
#           is generated in-kernel (no HBM mask tensor, no pad/slice).
# -----------------------------------------------------------------------------
def _pool_head_kernel(f_ref, g_ref, be_ref, wa1_ref, ba1_ref, wa2_ref, ba2_ref,
                      wc_ref, bc_ref, o_ref, m_sc, l_sc, acc_sc, *, n_valid, tm):
    step = pl.program_id(0)

    @pl.when(step == 0)
    def _():
        m_sc[...] = jnp.full(m_sc.shape, -jnp.inf, jnp.float32)
        l_sc[...] = jnp.zeros(l_sc.shape, jnp.float32)
        acc_sc[...] = jnp.zeros(acc_sc.shape, jnp.float32)

    row = jax.lax.broadcasted_iota(jnp.int32, (tm, 1), 0) + step * tm
    valid = row < n_valid
    x = jnp.where(valid, f_ref[...], 0.0)                  # sanitize ragged rows
    fn = _layernorm(x, g_ref[...], be_ref[...])            # (TM, 512)
    t = jnp.tanh(jnp.dot(fn.astype(MATMUL_DTYPE), wa1_ref[...],
                         preferred_element_type=jnp.float32) + ba1_ref[...])
    a = jnp.sum(t * wa2_ref[...], axis=-1, keepdims=True) + ba2_ref[...]   # (TM, 1)
    a = jnp.where(valid, a, NEG_INF)

    r = tm // 8
    a8 = a.reshape(r, 8, 1)
    fn8 = fn.reshape(r, 8, DIM)
    m_prev = m_sc[...]                                     # (8, 1)
    m_new = jnp.maximum(m_prev, jnp.max(a8, axis=0))
    corr = jnp.exp(m_prev - m_new)
    p = jnp.exp(a8 - m_new)                                # (r, 8, 1)
    l_sc[...] = corr * l_sc[...] + jnp.sum(p, axis=0)
    acc_sc[...] = corr * acc_sc[...] + jnp.sum(p * fn8, axis=0)
    m_sc[...] = m_new

    @pl.when(step == pl.num_programs(0) - 1)
    def _():
        m8 = m_sc[...]
        m_fin = jnp.max(m8, axis=0, keepdims=True)         # single cross-sublane merge
        w8 = jnp.exp(m8 - m_fin)
        l_fin = jnp.sum(w8 * l_sc[...], axis=0, keepdims=True)
        pooled = jnp.sum(w8 * acc_sc[...], axis=0, keepdims=True) * (1.0 / l_fin)
        o_ref[...] = jnp.dot(pooled.astype(MATMUL_DTYPE), wc_ref[...],
                             preferred_element_type=jnp.float32) + bc_ref[...]


def pool_head(feature, n_valid, g3, b3, wa1, ba1, wa2_row, ba2, wc, bc):
    n8, d = feature.shape          # n8 is a multiple of 8 (rounded in the caller)
    n_classes = wc.shape[1]
    tm = _row_tile(n8, POOL_TILE)
    return pl.pallas_call(
        partial(_pool_head_kernel, n_valid=n_valid, tm=tm),
        out_shape=jax.ShapeDtypeStruct((1, n_classes), jnp.float32),
        grid=(pl.cdiv(n8, tm),),
        in_specs=[pl.BlockSpec((tm, d), lambda i: (i, 0)),
                  pl.BlockSpec((1, d), lambda i: (0, 0)),
                  pl.BlockSpec((1, d), lambda i: (0, 0)),
                  pl.BlockSpec((d, ATTN_DIM), lambda i: (0, 0)),
                  pl.BlockSpec((1, ATTN_DIM), lambda i: (0, 0)),
                  pl.BlockSpec((1, ATTN_DIM), lambda i: (0, 0)),
                  pl.BlockSpec((1, 1), lambda i: (0, 0)),
                  pl.BlockSpec((d, n_classes), lambda i: (0, 0)),
                  pl.BlockSpec((1, n_classes), lambda i: (0, 0))],
        out_specs=pl.BlockSpec((1, n_classes), lambda i: (0, 0)),
        scratch_shapes=[pltpu.VMEM((8, 1), jnp.float32),
                        pltpu.VMEM((8, 1), jnp.float32),
                        pltpu.VMEM((8, DIM), jnp.float32)],
        compiler_params=_ARB,
    )(feature, g3, b3, wa1, ba1, wa2_row, ba2, wc, bc)


# -----------------------------------------------------------------------------
# Plain-JAX glue (indexing / tiny pieces)
# -----------------------------------------------------------------------------
def crop_to_windows(x, coords, ws):
    # LocalLayer's F.pad(..., mode='reflect') with add_length <= 0 == cropping.
    n = x.shape[0]
    add_length = (n // ws) * ws - n
    if add_length != 0:
        front = -(add_length // 2)
        back = -(add_length - add_length // 2)
        x = x[front:n - back]
        coords = coords[front:n - back]
    return x, coords


# -----------------------------------------------------------------------------
# Forward pass
# -----------------------------------------------------------------------------
def patient_forward(params, x):
    ws = params["window_size"]
    coords = x[:, :2]
    feat = x[:, 2:].astype(MATMUL_DTYPE)                  # bf16 activation stream
    h = linear_relu(feat, params["fc1_w"], params["fc1_b"])          # (N, 512) f32

    # ---- LocalLayer: GELU(x + WindowAttention(LN(x), coords)) [GELU in-kernel] ----
    h, coords = crop_to_windows(h, coords, ws)
    n = h.shape[0]
    nw = n // ws
    xw = h.reshape(nw, ws, DIM)
    y = local_window_attention(xw, coords, params["rpb_table"], params["shift"],
                               params["l1_ln_g"], params["l1_ln_b"],
                               params["wattn_qkv_w"], params["wattn_qkv_b"],
                               params["wattn_proj_w"], params["wattn_proj_b"])
    y = y.reshape(n, DIM)

    # ---- feature + ShuffleWindowAttention(norm1(feature)) [residual in-kernel] ----
    # the stride-nw shuffle is just the (ws, nw, DIM) view of the token stream;
    # no XLA transposes are materialized.
    ys = shuffle_window_attention(y.reshape(ws, nw, DIM),
                                  params["norm1_g"], params["norm1_b"],
                                  params["shift_qkv_w"], params["shift_qkv_b"],
                                  params["shift_proj_w"], params["shift_proj_b"])
    y = ys.reshape(n, DIM)

    # ---- feature + Mlp(norm2(feature))  [fully fused kernel] ----
    y = fused_mlp(y, params["norm2_g"], params["norm2_b"],
                  params["mlp_fc1_w"], params["mlp_fc1_b"],
                  params["mlp_fc2_w"], params["mlp_fc2_b"])
    return y


def hvtsurv_forward(params, x_list):
    feats = [patient_forward(params, x) for x in x_list]
    n_total = sum(int(f.shape[0]) for f in feats)
    pad8 = (-n_total) % 8                                  # keep row count a multiple of 8
    if pad8:
        feats.append(jnp.zeros((pad8, DIM), jnp.float32))
    feature = jnp.concatenate(feats, axis=0)               # (Ntot8, 512)
    logits = pool_head(feature, n_total,
                       params["norm3_g"], params["norm3_b"],
                       params["attn_a_w"], params["attn_a_b"],
                       params["attn_b_w"], params["attn_b_b"],
                       params["fc2_w"], params["fc2_b"])   # (1, n_classes)
    hazards = jax.nn.sigmoid(logits)
    S = jnp.cumprod(1.0 - hazards, axis=1)
    Y_hat = jnp.argmax(logits, axis=1, keepdims=True)      # topk(1) indices
    return hazards, S, Y_hat, None, None


# -----------------------------------------------------------------------------
# Deterministic parameter init (shapes from HVTSurv.__init__)
# -----------------------------------------------------------------------------
def init_params(key, window_size=16, n_classes=4):
    shift = int(math.sqrt(window_size))
    keys = jax.random.split(key, 12)

    def lin(k, din, dout, std=0.02):
        kw, kb = jax.random.split(k)
        return (jax.random.normal(kw, (din, dout), jnp.float32) * std,
                jax.random.normal(kb, (1, dout), jnp.float32) * std)

    def mm(w):   # MXU operands are stored pre-cast to bf16 (halves weight DMA)
        return w.astype(MATMUL_DTYPE)

    p = {"window_size": window_size, "shift": shift}
    w, b = lin(keys[0], HIDDEN_DIM, DIM)
    p["fc1_w"], p["fc1_b"] = mm(w), b
    p["l1_ln_g"] = jnp.ones((1, DIM), jnp.float32)
    p["l1_ln_b"] = jnp.zeros((1, DIM), jnp.float32)
    p["rpb_table"] = jax.random.normal(keys[1], (2 * shift + 1, NUM_HEADS),
                                       jnp.float32) * 0.02
    w, b = lin(keys[2], DIM, 3 * DIM)
    p["wattn_qkv_w"], p["wattn_qkv_b"] = mm(w), b
    w, b = lin(keys[3], DIM, DIM)
    p["wattn_proj_w"], p["wattn_proj_b"] = mm(w), b
    p["norm1_g"] = jnp.ones((1, DIM), jnp.float32)
    p["norm1_b"] = jnp.zeros((1, DIM), jnp.float32)
    w, b = lin(keys[4], DIM, 3 * DIM)
    p["shift_qkv_w"], p["shift_qkv_b"] = mm(w), b
    w, b = lin(keys[5], DIM, DIM)
    p["shift_proj_w"], p["shift_proj_b"] = mm(w), b
    p["norm2_g"] = jnp.ones((1, DIM), jnp.float32)
    p["norm2_b"] = jnp.zeros((1, DIM), jnp.float32)
    w, b = lin(keys[6], DIM, DIM)
    p["mlp_fc1_w"], p["mlp_fc1_b"] = mm(w), b
    w, b = lin(keys[7], DIM, DIM)
    p["mlp_fc2_w"], p["mlp_fc2_b"] = mm(w), b
    p["norm3_g"] = jnp.ones((1, DIM), jnp.float32)
    p["norm3_b"] = jnp.zeros((1, DIM), jnp.float32)
    w, b = lin(keys[8], DIM, ATTN_DIM)
    p["attn_a_w"], p["attn_a_b"] = mm(w), b
    wb_, bb = lin(keys[9], ATTN_DIM, 1)
    p["attn_b_w"] = jnp.transpose(wb_)         # stored as (1, 256) row, f32 (VPU use)
    p["attn_b_b"] = bb                         # (1, 1)
    w, b = lin(keys[10], DIM, n_classes)
    p["fc2_w"], p["fc2_b"] = mm(w), b
    return p


if __name__ == "__main__":
    key = jax.random.PRNGKey(0)
    kp, kf1, kf2, kc1, kc2 = jax.random.split(key, 5)
    params = init_params(kp, window_size=16, n_classes=4)

    def make_patient(kf, kc, n):
        coords = jax.random.randint(kc, (n, 2), 0, 32).astype(jnp.float32)
        feats = jax.random.normal(kf, (n, HIDDEN_DIM), jnp.float32)
        return jnp.concatenate([coords, feats], axis=1)        # (n, 770)

    # two "patients" (bags of patches); 140 exercises the reflect-crop path,
    # both give 8 windows so the M = 128-row attention block path is exercised.
    x_path = [make_patient(kf1, kc1, 128), make_patient(kf2, kc2, 140)]

    hazards, S, Y_hat, _, _ = hvtsurv_forward(params, x_path)
    jax.block_until_ready((hazards, S, Y_hat))
    assert hazards.shape == (1, 4) and S.shape == (1, 4) and Y_hat.shape == (1, 1)
    assert bool(jnp.all(jnp.isfinite(hazards))) and bool(jnp.all(jnp.isfinite(S)))
    print("KERNEL_OK")
</pallas_src>

<mosaic_0001>
module attributes {stable_mosaic.version = 11 : i64} {
  func.func @_linear_relu_kernel(%arg0: i32, %arg1: memref<128x768xbf16, #tpu.memory_space<vmem>>, %arg2: memref<768x512xbf16, #tpu.memory_space<vmem>>, %arg3: memref<1x512xf32, #tpu.memory_space<vmem>>, %arg4: memref<128x512xf32, #tpu.memory_space<vmem>>) attributes {dimension_semantics = [#tpu.dimension_semantics<parallel>], iteration_bounds = array<i64: 1>, scalar_prefetch = 0 : i64, scratch_operands = 0 : i64, tpu.core_type = #tpu.core_type<tc>, window_params = [{transform_indices = @transform_0, window_bounds = array<i64: 128, 768>}, {pipeline_mode = #tpu.pipeline_mode<synchronous>, transform_indices = @transform_1, window_bounds = array<i64: 768, 512>}, {pipeline_mode = #tpu.pipeline_mode<synchronous>, transform_indices = @transform_2, window_bounds = array<i64: 1, 512>}, {transform_indices = @transform_3, window_bounds = array<i64: 128, 512>}]} {
    %c0 = arith.constant 0 : index
    %c0_0 = arith.constant 0 : index
    %0 = vector.load %arg1[%c0, %c0_0] : memref<128x768xbf16, #tpu.memory_space<vmem>>, vector<128x768xbf16>
    %c0_1 = arith.constant 0 : index
    %c0_2 = arith.constant 0 : index
    %1 = vector.load %arg2[%c0_1, %c0_2] : memref<768x512xbf16, #tpu.memory_space<vmem>>, vector<768x512xbf16>
    %cst = arith.constant dense<0.000000e+00> : vector<128x512xf32>
    %2 = tpu.matmul %0, %1, %cst {dimension_numbers = #tpu.dot_dimension_numbers<[1], [0], [0], [1], [0, 0, 1, 1], [], []>} : vector<128x768xbf16>, vector<768x512xbf16>, vector<128x512xf32> -> vector<128x512xf32>
    %c0_3 = arith.constant 0 : index
    %c0_4 = arith.constant 0 : index
    %3 = vector.load %arg3[%c0_3, %c0_4] : memref<1x512xf32, #tpu.memory_space<vmem>>, vector<1x512xf32>
    %4 = vector.broadcast %3 : vector<1x512xf32> to vector<128x512xf32>
    %5 = arith.addf %2, %4 : vector<128x512xf32>
    %cst_5 = arith.constant 0.000000e+00 : f32
    %6 = vector.broadcast %cst_5 : f32 to vector<128x512xf32>
    %7 = arith.maximumf %5, %6 : vector<128x512xf32>
    %c0_6 = arith.constant 0 : index
    %c0_7 = arith.constant 0 : index
    %8 = vector.load %arg4[%c0_6, %c0_7] : memref<128x512xf32, #tpu.memory_space<vmem>>, vector<128x512xf32>
    tpu.vector_store %arg4[%c0_6, %c0_7], %7 {strides = array<i32>} : memref<128x512xf32, #tpu.memory_space<vmem>>, vector<128x512xf32>,
    return
  }
  func.func @transform_0(%arg0: i32) -> (i32, i32) {
    %c0_i32 = arith.constant 0 : i32
    %c0_i32_0 = arith.constant 0 : i32
    return %arg0, %c0_i32 : i32, i32
  }
  func.func @transform_1(%arg0: i32) -> (i32, i32) {
    %c0_i32 = arith.constant 0 : i32
    %c0_i32_0 = arith.constant 0 : i32
    %c0_i32_1 = arith.constant 0 : i32
    return %c0_i32, %c0_i32_0 : i32, i32
  }
  func.func @transform_2(%arg0: i32) -> (i32, i32) {
    %c0_i32 = arith.constant 0 : i32
    %c0_i32_0 = arith.constant 0 : i32
    %c0_i32_1 = arith.constant 0 : i32
    return %c0_i32, %c0_i32_0 : i32, i32
  }
  func.func @transform_3(%arg0: i32) -> (i32, i32) {
    %c0_i32 = arith.constant 0 : i32
    %c0_i32_0 = arith.constant 0 : i32
    return %arg0, %c0_i32 : i32, i32
  }
}

</mosaic_0001>

<llo_original>
// kernel: tpu_custom_call.1
$region0: #{tpu_custom_call.1}
  #allocation0 [shape = 'u32[]', space=smem, size = 0x4, offset = 0x4, fixed_abs, tag = 'smem constant byte address 0x4 - core index']
  #allocation1 [shape = 'u32[144,128]{1,0:T(1,128)}', space=vmem, size = 0x12000, scoped, tag = 'internal scratch']
  %s0 = inlined_call_operand.hbm [shape: bf16[128,768], index: 0, kind: input, shape index: {}]
  %s1 = inlined_call_operand.hbm [shape: bf16[768,512], index: 1, kind: input, shape index: {}]
  %s2 = inlined_call_operand.vmem [shape: f32[1,512], index: 2, kind: input, shape index: {}]
  %s3 = inlined_call_operand.hbm [shape: f32[128,512], index: 3, kind: output, shape index: {}]
  %s4 = sld [smem:[#allocation0]]
  $region30: #{tpu_custom_call.1} parent=0
    _
  %s6 = ssub.s32 1, %s4
  %s7 = scalar_select 0, %s6, %s4
  $region1: #{tpu_custom_call.1} parent=0
    #allocation2 [shape = 'u8[196608]{0}', space=vmem, size = 0x30000, scoped, tag = 'input window, operand 0, single buffered']
    #allocation3 [shape = 's32[1]{0}', space=sflag, size = 0x4, scoped, tag = 'scoped memory for tpu_custom_call.1']
    #allocation4 [shape = 's32[1]{0}', space=sflag, size = 0x4, scoped, tag = 'scoped memory for tpu_custom_call.1']
    #allocation5 [shape = 'u8[786432]{0}', space=vmem, size = 0xc0000, scoped, tag = 'input window, operand 1, single buffered']
    #allocation6 [shape = 's32[1]{0}', space=sflag, size = 0x4, scoped, tag = 'scoped memory for tpu_custom_call.1']
    #allocation7 [shape = 'u8[262144]{0}', space=vmem, size = 0x40000, scoped, tag = 'output window, operand 0, single buffered']
    %8 = vsyncpa [#allocation3], 0
    %9 = vsyncpa [#allocation6], 0
    %10 = vsyncpa [#allocation4], 0
    // Predicated region
    $region2: #{tpu_custom_call.1} parent=1 // pred_check
      _
    $region3: #{tpu_custom_call.1} parent=1 // pred_check_branch
      %12 = sbr.rel (0) target = $region5
    $region4: #{tpu_custom_call.1} parent=1 // pred_region
      %s14 = ssub.s32 6144, 6144
      %15 = vsyncadd [#allocation3], %s14
      %s16 = sshll.u32 [#allocation2], 4
      %s17 = int_to_ptr.vmem [resolvable:$true] %s16
      %22 = dma.hbm_to_vmem [thread:$0]  %s0, 6144, %s17, [#allocation3], 384, 384, 24
    $region5: #{tpu_custom_call.1} parent=1 // pred_fallthru
      _
    // Predicated region
    $region6: #{tpu_custom_call.1} parent=1 // pred_check
      _
    $region7: #{tpu_custom_call.1} parent=1 // pred_check_branch
      %24 = sbr.rel (0) target = $region9
    $region8: #{tpu_custom_call.1} parent=1 // pred_region
      %s26 = ssub.s32 24576, 24576
      %27 = vsyncadd [#allocation6], %s26
      %s28 = sshll.u32 [#allocation5], 4
      %s29 = int_to_ptr.vmem [resolvable:$true] %s28
      %34 = dma.hbm_to_vmem [thread:$0]  %s1, 24576, %s29, [#allocation6], 256, 256, 16
    $region9: #{tpu_custom_call.1} parent=1 // pred_fallthru
      _
    // Predicated region
    $region10: #{tpu_custom_call.1} parent=1 // pred_check
      _
    $region11: #{tpu_custom_call.1} parent=1 // pred_check_branch
      %36 = sbr.rel (0) target = $region13
    $region12: #{tpu_custom_call.1} parent=1 // pred_region
      _
    $region13: #{tpu_custom_call.1} parent=1 // pred_fallthru
      _
    // Predicated region
    $region14: #{tpu_custom_call.1} parent=1 // pred_check
      _
    $region15: #{tpu_custom_call.1} parent=1 // pred_check_branch
      %38 = sbr.rel (0) target = $region17
    $region16: #{tpu_custom_call.1} parent=1 // pred_region
      %39 = dma.done [#allocation3], 6144
    $region17: #{tpu_custom_call.1} parent=1 // pred_fallthru
      _
    // Predicated region
    $region18: #{tpu_custom_call.1} parent=1 // pred_check
      _
    $region19: #{tpu_custom_call.1} parent=1 // pred_check_branch
      %41 = sbr.rel (0) target = $region21
    $region20: #{tpu_custom_call.1} parent=1 // pred_region
      %42 = dma.done [#allocation6], 24576
    $region21: #{tpu_custom_call.1} parent=1 // pred_fallthru
      _
    %v43 = vld [vmem:[#allocation2] sm:$0xff]
    %v44 = vld [vmem:[#allocation2 + $0x8] sm:$0xff]
    %v45 = vld [vmem:[#allocation2 + $0x10] sm:$0xff]
    %v46 = vld [vmem:[#allocation2 + $0x18] sm:$0xff]
    %v47 = vld [vmem:[#allocation2 + $0x20] sm:$0xff]
    %v48 = vld [vmem:[#allocation2 + $0x28] sm:$0xff]
    %v49 = vld [vmem:[#allocation2 + $0x30] sm:$0xff]
    %v50 = vld [vmem:[#allocation2 + $0x38] sm:$0xff]
    %v51 = vld [vmem:[#allocation2 + $0x40] sm:$0xff]
    %v52 = vld [vmem:[#allocation2 + $0x48] sm:$0xff]
    %v53 = vld [vmem:[#allocation2 + $0x50] sm:$0xff]
    %v54 = vld [vmem:[#allocation2 + $0x58] sm:$0xff]
    %v55 = vld [vmem:[#allocation2 + $0x60] sm:$0xff]
    %v56 = vld [vmem:[#allocation2 + $0x68] sm:$0xff]
    %v57 = vld [vmem:[#allocation2 + $0x70] sm:$0xff]
    %v58 = vld [vmem:[#allocation2 + $0x78] sm:$0xff]
    %v59 = vld [vmem:[#allocation2 + $0x80] sm:$0xff]
    %v60 = vld [vmem:[#allocation2 + $0x88] sm:$0xff]
    %v61 = vld [vmem:[#allocation2 + $0x90] sm:$0xff]
    %v62 = vld [vmem:[#allocation2 + $0x98] sm:$0xff]
    %v63 = vld [vmem:[#allocation2 + $0xa0] sm:$0xff]
    %v64 = vld [vmem:[#allocation2 + $0xa8] sm:$0xff]
    %v65 = vld [vmem:[#allocation2 + $0xb0] sm:$0xff]
    %v66 = vld [vmem:[#allocation2 + $0xb8] sm:$0xff]
    %v67 = vld [vmem:[#allocation2 + $0xc0] sm:$0xff]
    %v68 = vld [vmem:[#allocation2 + $0xc8] sm:$0xff]
    %v69 = vld [vmem:[#allocation2 + $0xd0] sm:$0xff]
    %v70 = vld [vmem:[#allocation2 + $0xd8] sm:$0xff]
    %v71 = vld [vmem:[#allocation2 + $0xe0] sm:$0xff]
    %v72 = vld [vmem:[#allocation2 + $0xe8] sm:$0xff]
    %v73 = vld [vmem:[#allocation2 + $0xf0] sm:$0xff]
    %v74 = vld [vmem:[#allocation2 + $0xf8] sm:$0xff]
    %v75 = vld [vmem:[#allocation2 + $0x100] sm:$0xff]
    %v76 = vld [vmem:[#allocation2 + $0x108] sm:$0xff]
    %v77 = vld [vmem:[#allocation2 + $0x110] sm:$0xff]
    %v78 = vld [vmem:[#allocation2 + $0x118] sm:$0xff]
    %v79 = vld [vmem:[#allocation2 + $0x120] sm:$0xff]
    %v80 = vld [vmem:[#allocation2 + $0x128] sm:$0xff]
    %v81 = vld [vmem:[#allocation2 + $0x130] sm:$0xff]
    %v82 = vld [vmem:[#allocation2 + $0x138] sm:$0xff]
    %v83 = vld [vmem:[#allocation2 + $0x140] sm:$0xff]
    %v84 = vld [vmem:[#allocation2 + $0x148] sm:$0xff]
    %v85 = vld [vmem:[#allocation2 + $0x150] sm:$0xff]
    %v86 = vld [vmem:[#allocation2 + $0x158] sm:$0xff]
    %v87 = vld [vmem:[#allocation2 + $0x160] sm:$0xff]
    %v88 = vld [vmem:[#allocation2 + $0x168] sm:$0xff]
    %v89 = vld [vmem:[#allocation2 + $0x170] sm:$0xff]
    %v90 = vld [vmem:[#allocation2 + $0x178] sm:$0xff]
    %v91 = vld [vmem:[#allocation5] sm:$0xff]
    %v92 = vld [vmem:[#allocation5 + $0x8] sm:$0xff]
    %v93 = vld [vmem:[#allocation5 + $0x10] sm:$0xff]
    %v94 = vld [vmem:[#allocation5 + $0x18] sm:$0xff]
    %v95 = vld [vmem:[#allocation5 + $0x20] sm:$0xff]
    %v96 = vld [vmem:[#allocation5 + $0x28] sm:$0xff]
    %v97 = vld [vmem:[#allocation5 + $0x30] sm:$0xff]
    %v98 = vld [vmem:[#allocation5 + $0x38] sm:$0xff]
    %v99 = vld [vmem:[#allocation5 + $0x40] sm:$0xff]
    %v100 = vld [vmem:[#allocation5 + $0x48] sm:$0xff]
    %v101 = vld [vmem:[#allocation5 + $0x50] sm:$0xff]
    %v102 = vld [vmem:[#allocation5 + $0x58] sm:$0xff]
    %v103 = vld [vmem:[#allocation5 + $0x60] sm:$0xff]
    %v104 = vld [vmem:[#allocation5 + $0x68] sm:$0xff]
    %v105 = vld [vmem:[#allocation5 + $0x70] sm:$0xff]
    %v106 = vld [vmem:[#allocation5 + $0x78] sm:$0xff]
    %v107 = vld [vmem:[#allocation5 + $0x80] sm:$0xff]
    %v108 = vld [vmem:[#allocation5 + $0x88] sm:$0xff]
    %v109 = vld [vmem:[#allocation5 + $0x90] sm:$0xff]
    %v110 = vld [vmem:[#allocation5 + $0x98] sm:$0xff]
    %v111 = vld [vmem:[#allocation5 + $0xa0] sm:$0xff]
    %v112 = vld [vmem:[#allocation5 + $0xa8] sm:$0xff]
    %v113 = vld [vmem:[#allocation5 + $0xb0] sm:$0xff]
    %v114 = vld [vmem:[#allocation5 + $0xb8] sm:$0xff]
    %v115 = vld [vmem:[#allocation5 + $0xc0] sm:$0xff]
    %v116 = vld [vmem:[#allocation5 + $0xc8] sm:$0xff]
    %v117 = vld [vmem:[#allocation5 + $0xd0] sm:$0xff]
    %v118 = vld [vmem:[#allocation5 + $0xd8] sm:$0xff]
    %v119 = vld [vmem:[#allocation5 + $0xe0] sm:$0xff]
    %v120 = vld [vmem:[#allocation5 + $0xe8] sm:$0xff]
    %v121 = vld [vmem:[#allocation5 + $0xf0] sm:$0xff]
    %v122 = vld [vmem:[#allocation5 + $0xf8] sm:$0xff]
    %v123 = vld [vmem:[#allocation5 + $0x100] sm:$0xff]
    %v124 = vld [vmem:[#allocation5 + $0x108] sm:$0xff]
    %v125 = vld [vmem:[#allocation5 + $0x110] sm:$0xff]
    %v126 = vld [vmem:[#allocation5 + $0x118] sm:$0xff]
    %v127 = vld [vmem:[#allocation5 + $0x120] sm:$0xff]
    %v128 = vld [vmem:[#allocation5 + $0x128] sm:$0xff]
    %v129 = vld [vmem:[#allocation5 + $0x130] sm:$0xff]
    %v130 = vld [vmem:[#allocation5 + $0x138] sm:$0xff]
    %v131 = vld [vmem:[#allocation5 + $0x140] sm:$0xff]
    %v132 = vld [vmem:[#allocation5 + $0x148] sm:$0xff]
    %v133 = vld [vmem:[#allocation5 + $0x150] sm:$0xff]
    %v134 = vld [vmem:[#allocation5 + $0x158] sm:$0xff]
    %v135 = vld [vmem:[#allocation5 + $0x160] sm:$0xff]
    %v136 = vld [vmem:[#allocation5 + $0x168] sm:$0xff]
    %v137 = vld [vmem:[#allocation5 + $0x170] sm:$0xff]
    %v138 = vld [vmem:[#allocation5 + $0x178] sm:$0xff]
    %v139 = vld [vmem:[#allocation5 + $0x180] sm:$0xff]
    %v140 = vld [vmem:[#allocation5 + $0x188] sm:$0xff]
    %v141 = vld [vmem:[#allocation5 + $0x190] sm:$0xff]
    %v142 = vld [vmem:[#allocation5 + $0x198] sm:$0xff]
    %v143 = vld [vmem:[#allocation5 + $0x1a0] sm:$0xff]
    %v144 = vld [vmem:[#allocation5 + $0x1a8] sm:$0xff]
    %v145 = vld [vmem:[#allocation5 + $0x1b0] sm:$0xff]
    %v146 = vld [vmem:[#allocation5 + $0x1b8] sm:$0xff]
    %v147 = vld [vmem:[#allocation5 + $0x1c0] sm:$0xff]
    %v148 = vld [vmem:[#allocation5 + $0x1c8] sm:$0xff]
    %v149 = vld [vmem:[#allocation5 + $0x1d0] sm:$0xff]
    %v150 = vld [vmem:[#allocation5 + $0x1d8] sm:$0xff]
    %v151 = vld [vmem:[#allocation5 + $0x1e0] sm:$0xff]
    %v152 = vld [vmem:[#allocation5 + $0x1e8] sm:$0xff]
    %v153 = vld [vmem:[#allocation5 + $0x1f0] sm:$0xff]
    %v154 = vld [vmem:[#allocation5 + $0x1f8] sm:$0xff]
    %v155 = vld [vmem:[#allocation5 + $0x200] sm:$0xff]
    %v156 = vld [vmem:[#allocation5 + $0x208] sm:$0xff]
    %v157 = vld [vmem:[#allocation5 + $0x210] sm:$0xff]
    %v158 = vld [vmem:[#allocation5 + $0x218] sm:$0xff]
    %v159 = vld [vmem:[#allocation5 + $0x220] sm:$0xff]
    %v160 = vld [vmem:[#allocation5 + $0x228] sm:$0xff]
    %v161 = vld [vmem:[#allocation5 + $0x230] sm:$0xff]
    %v162 = vld [vmem:[#allocation5 + $0x238] sm:$0xff]
    %v163 = vld [vmem:[#allocation5 + $0x240] sm:$0xff]
    %v164 = vld [vmem:[#allocation5 + $0x248] sm:$0xff]
    %v165 = vld [vmem:[#allocation5 + $0x250] sm:$0xff]
    %v166 = vld [vmem:[#allocation5 + $0x258] sm:$0xff]
    %v167 = vld [vmem:[#allocation5 + $0x260] sm:$0xff]
    %v168 = vld [vmem:[#allocation5 + $0x268] sm:$0xff]
    %v169 = vld [vmem:[#allocation5 + $0x270] sm:$0xff]
    %v170 = vld [vmem:[#allocation5 + $0x278] sm:$0xff]
    %v171 = vld [vmem:[#allocation5 + $0x280] sm:$0xff]
    %v172 = vld [vmem:[#allocation5 + $0x288] sm:$0xff]
    %v173 = vld [vmem:[#allocation5 + $0x290] sm:$0xff]
    %v174 = vld [vmem:[#allocation5 + $0x298] sm:$0xff]
    %v175 = vld [vmem:[#allocation5 + $0x2a0] sm:$0xff]
    %v176 = vld [vmem:[#allocation5 + $0x2a8] sm:$0xff]
    %v177 = vld [vmem:[#allocation5 + $0x2b0] sm:$0xff]
    %v178 = vld [vmem:[#allocation5 + $0x2b8] sm:$0xff]
    %v179 = vld [vmem:[#allocation5 + $0x2c0] sm:$0xff]
    %v180 = vld [vmem:[#allocation5 + $0x2c8] sm:$0xff]
    %v181 = vld [vmem:[#allocation5 + $0x2d0] sm:$0xff]
    %v182 = vld [vmem:[#allocation5 + $0x2d8] sm:$0xff]
    %v183 = vld [vmem:[#allocation5 + $0x2e0] sm:$0xff]
    %v184 = vld [vmem:[#allocation5 + $0x2e8] sm:$0xff]
    %v185 = vld [vmem:[#allocation5 + $0x2f0] sm:$0xff]
    %v186 = vld [vmem:[#allocation5 + $0x2f8] sm:$0xff]
    %v187 = vld [vmem:[#allocation5 + $0x300] sm:$0xff]
    %v188 = vld [vmem:[#allocation5 + $0x308] sm:$0xff]
    %v189 = vld [vmem:[#allocation5 + $0x310] sm:$0xff]
    %v190 = vld [vmem:[#allocation5 + $0x318] sm:$0xff]
    %v191 = vld [vmem:[#allocation5 + $0x320] sm:$0xff]
    %v192 = vld [vmem:[#allocation5 + $0x328] sm:$0xff]
    %v193 = vld [vmem:[#allocation5 + $0x330] sm:$0xff]
    %v194 = vld [vmem:[#allocation5 + $0x338] sm:$0xff]
    %v195 = vld [vmem:[#allocation5 + $0x340] sm:$0xff]
    %v196 = vld [vmem:[#allocation5 + $0x348] sm:$0xff]
    %v197 = vld [vmem:[#allocation5 + $0x350] sm:$0xff]
    %v198 = vld [vmem:[#allocation5 + $0x358] sm:$0xff]
    %v199 = vld [vmem:[#allocation5 + $0x360] sm:$0xff]
    %v200 = vld [vmem:[#allocation5 + $0x368] sm:$0xff]
    %v201 = vld [vmem:[#allocation5 + $0x370] sm:$0xff]
    %v202 = vld [vmem:[#allocation5 + $0x378] sm:$0xff]
    %v203 = vld [vmem:[#allocation5 + $0x380] sm:$0xff]
    %v204 = vld [vmem:[#allocation5 + $0x388] sm:$0xff]
    %v205 = vld [vmem:[#allocation5 + $0x390] sm:$0xff]
    %v206 = vld [vmem:[#allocation5 + $0x398] sm:$0xff]
    %v207 = vld [vmem:[#allocation5 + $0x3a0] sm:$0xff]
    %v208 = vld [vmem:[#allocation5 + $0x3a8] sm:$0xff]
    %v209 = vld [vmem:[#allocation5 + $0x3b0] sm:$0xff]
    %v210 = vld [vmem:[#allocation5 + $0x3b8] sm:$0xff]
    %v211 = vld [vmem:[#allocation5 + $0x3c0] sm:$0xff]
    %v212 = vld [vmem:[#allocation5 + $0x3c8] sm:$0xff]
    %v213 = vld [vmem:[#allocation5 + $0x3d0] sm:$0xff]
    %v214 = vld [vmem:[#allocation5 + $0x3d8] sm:$0xff]
    %v215 = vld [vmem:[#allocation5 + $0x3e0] sm:$0xff]
    %v216 = vld [vmem:[#allocation5 + $0x3e8] sm:$0xff]
    %v217 = vld [vmem:[#allocation5 + $0x3f0] sm:$0xff]
    %v218 = vld [vmem:[#allocation5 + $0x3f8] sm:$0xff]
    %v219 = vld [vmem:[#allocation5 + $0x400] sm:$0xff]
    %v220 = vld [vmem:[#allocation5 + $0x408] sm:$0xff]
    %v221 = vld [vmem:[#allocation5 + $0x410] sm:$0xff]
    %v222 = vld [vmem:[#allocation5 + $0x418] sm:$0xff]
    %v223 = vld [vmem:[#allocation5 + $0x420] sm:$0xff]
    %v224 = vld [vmem:[#allocation5 + $0x428] sm:$0xff]
    %v225 = vld [vmem:[#allocation5 + $0x430] sm:$0xff]
    %v226 = vld [vmem:[#allocation5 + $0x438] sm:$0xff]
    %v227 = vld [vmem:[#allocation5 + $0x440] sm:$0xff]
    %v228 = vld [vmem:[#allocation5 + $0x448] sm:$0xff]
    %v229 = vld [vmem:[#allocation5 + $0x450] sm:$0xff]
    %v230 = vld [vmem:[#allocation5 + $0x458] sm:$0xff]
    %v231 = vld [vmem:[#allocation5 + $0x460] sm:$0xff]
    %v232 = vld [vmem:[#allocation5 + $0x468] sm:$0xff]
    %v233 = vld [vmem:[#allocation5 + $0x470] sm:$0xff]
    %v234 = vld [vmem:[#allocation5 + $0x478] sm:$0xff]
    %v235 = vld [vmem:[#allocation5 + $0x480] sm:$0xff]
    %v236 = vld [vmem:[#allocation5 + $0x488] sm:$0xff]
    %v237 = vld [vmem:[#allocation5 + $0x490] sm:$0xff]
    %v238 = vld [vmem:[#allocation5 + $0x498] sm:$0xff]
    %v239 = vld [vmem:[#allocation5 + $0x4a0] sm:$0xff]
    %v240 = vld [vmem:[#allocation5 + $0x4a8] sm:$0xff]
    %v241 = vld [vmem:[#allocation5 + $0x4b0] sm:$0xff]
    %v242 = vld [vmem:[#allocation5 + $0x4b8] sm:$0xff]
    %v243 = vld [vmem:[#allocation5 + $0x4c0] sm:$0xff]
    %v244 = vld [vmem:[#allocation5 + $0x4c8] sm:$0xff]
    %v245 = vld [vmem:[#allocation5 + $0x4d0] sm:$0xff]
    %v246 = vld [vmem:[#allocation5 + $0x4d8] sm:$0xff]
    %v247 = vld [vmem:[#allocation5 + $0x4e0] sm:$0xff]
    %v248 = vld [vmem:[#allocation5 + $0x4e8] sm:$0xff]
    %v249 = vld [vmem:[#allocation5 + $0x4f0] sm:$0xff]
    %v250 = vld [vmem:[#allocation5 + $0x4f8] sm:$0xff]
    %v251 = vld [vmem:[#allocation5 + $0x500] sm:$0xff]
    %v252 = vld [vmem:[#allocation5 + $0x508] sm:$0xff]
    %v253 = vld [vmem:[#allocation5 + $0x510] sm:$0xff]
    %v254 = vld [vmem:[#allocation5 + $0x518] sm:$0xff]
    %v255 = vld [vmem:[#allocation5 + $0x520] sm:$0xff]
    %v256 = vld [vmem:[#allocation5 + $0x528] sm:$0xff]
    %v257 = vld [vmem:[#allocation5 + $0x530] sm:$0xff]
    %v258 = vld [vmem:[#allocation5 + $0x538] sm:$0xff]
    %v259 = vld [vmem:[#allocation5 + $0x540] sm:$0xff]
    %v260 = vld [vmem:[#allocation5 + $0x548] sm:$0xff]
    %v261 = vld [vmem:[#allocation5 + $0x550] sm:$0xff]
    %v262 = vld [vmem:[#allocation5 + $0x558] sm:$0xff]
    %v263 = vld [vmem:[#allocation5 + $0x560] sm:$0xff]
    %v264 = vld [vmem:[#allocation5 + $0x568] sm:$0xff]
    %v265 = vld [vmem:[#allocation5 + $0x570] sm:$0xff]
    %v266 = vld [vmem:[#allocation5 + $0x578] sm:$0xff]
    %v267 = vld [vmem:[#allocation5 + $0x580] sm:$0xff]
    %v268 = vld [vmem:[#allocation5 + $0x588] sm:$0xff]
    %v269 = vld [vmem:[#allocation5 + $0x590] sm:$0xff]
    %v270 = vld [vmem:[#allocation5 + $0x598] sm:$0xff]
    %v271 = vld [vmem:[#allocation5 + $0x5a0] sm:$0xff]
    %v272 = vld [vmem:[#allocation5 + $0x5a8] sm:$0xff]
    %v273 = vld [vmem:[#allocation5 + $0x5b0] sm:$0xff]
    %v274 = vld [vmem:[#allocation5 + $0x5b8] sm:$0xff]
    %v275 = vld [vmem:[#allocation5 + $0x5c0] sm:$0xff]
    %v276 = vld [vmem:[#allocation5 + $0x5c8] sm:$0xff]
    %v277 = vld [vmem:[#allocation5 + $0x5d0] sm:$0xff]
    %v278 = vld [vmem:[#allocation5 + $0x5d8] sm:$0xff]
    %v279 = vld [vmem:[#allocation5 + $0x5e0] sm:$0xff]
    %v280 = vld [vmem:[#allocation5 + $0x5e8] sm:$0xff]
    %v281 = vld [vmem:[#allocation5 + $0x5f0] sm:$0xff]
    %v282 = vld [vmem:[#allocation5 + $0x5f8] sm:$0xff]
    %v283 = vld [vmem:[%s2] sm:$0xf]
    %v285 = vlaneseq
    %v286 = vshrl.u32 %v285, 7
    %v287 = vsub.s32 0, %v286
    %v288 = vrot.slane %v283, %v287
    %v289 = vlaneseq
    %v290 = vshrl.u32 %v289, 7
    %v291 = vsub.s32 1, %v290
    %v292 = vrot.slane %v283, %v291
    %v293 = vlaneseq
    %v294 = vshrl.u32 %v293, 7
    %v295 = vsub.s32 2, %v294
    %v296 = vrot.slane %v283, %v295
    %v297 = vlaneseq
    %v298 = vshrl.u32 %v297, 7
    %v299 = vsub.s32 3, %v298
    %v300 = vrot.slane %v283, %v299
    %v353 = vunpack.c.l.b16 %v43
    %v354 = vunpack.c.h.b16 %v43
    %v355 = vunpack.c.l.b16 %v44
    %v356 = vunpack.c.h.b16 %v44
    %v357 = vunpack.c.l.b16 %v45
    %v358 = vunpack.c.h.b16 %v45
    %v359 = vunpack.c.l.b16 %v46
    %v360 = vunpack.c.h.b16 %v46
    %v361 = vunpack.c.l.b16 %v47
    %v362 = vunpack.c.h.b16 %v47
    %v363 = vunpack.c.l.b16 %v48
    %v364 = vunpack.c.h.b16 %v48
    %v365 = vunpack.c.l.b16 %v49
    %v366 = vunpack.c.h.b16 %v49
    %v367 = vunpack.c.l.b16 %v50
    %v368 = vunpack.c.h.b16 %v50
    %v369 = vunpack.c.l.b16 %v51
    %v370 = vunpack.c.h.b16 %v51
    %v371 = vunpack.c.l.b16 %v52
    %v372 = vunpack.c.h.b16 %v52
    %v373 = vunpack.c.l.b16 %v53
    %v374 = vunpack.c.h.b16 %v53
    %v375 = vunpack.c.l.b16 %v54
    %v376 = vunpack.c.h.b16 %v54
    %v377 = vunpack.c.l.b16 %v55
    %v378 = vunpack.c.h.b16 %v55
    %v379 = vunpack.c.l.b16 %v56
    %v380 = vunpack.c.h.b16 %v56
    %v381 = vunpack.c.l.b16 %v57
    %v382 = vunpack.c.h.b16 %v57
    %v383 = vunpack.c.l.b16 %v58
    %v384 = vunpack.c.h.b16 %v58
    %v385 = vunpack.c.l.b16 %v59
    %v386 = vunpack.c.h.b16 %v59
    %v387 = vunpack.c.l.b16 %v60
    %v388 = vunpack.c.h.b16 %v60
    %v389 = vunpack.c.l.b16 %v61
    %v390 = vunpack.c.h.b16 %v61
    %v391 = vunpack.c.l.b16 %v62
    %v392 = vunpack.c.h.b16 %v62
    %v393 = vunpack.c.l.b16 %v63
    %v394 = vunpack.c.h.b16 %v63
    %v395 = vunpack.c.l.b16 %v64
    %v396 = vunpack.c.h.b16 %v64
    %v397 = vunpack.c.l.b16 %v65
    %v398 = vunpack.c.h.b16 %v65
    %v399 = vunpack.c.l.b16 %v66
    %v400 = vunpack.c.h.b16 %v66
    %v401 = vunpack.c.l.b16 %v67
    %v402 = vunpack.c.h.b16 %v67
    %v403 = vunpack.c.l.b16 %v68
    %v404 = vunpack.c.h.b16 %v68
    %v405 = vunpack.c.l.b16 %v69
    %v406 = vunpack.c.h.b16 %v69
    %v407 = vunpack.c.l.b16 %v70
    %v408 = vunpack.c.h.b16 %v70
    %v409 = vunpack.c.l.b16 %v71
    %v410 = vunpack.c.h.b16 %v71
    %v411 = vunpack.c.l.b16 %v72
    %v412 = vunpack.c.h.b16 %v72
    %v413 = vunpack.c.l.b16 %v73
    %v414 = vunpack.c.h.b16 %v73
    %v415 = vunpack.c.l.b16 %v74
    %v416 = vunpack.c.h.b16 %v74
    %v417 = vunpack.c.l.b16 %v75
    %v418 = vunpack.c.h.b16 %v75
    %v419 = vunpack.c.l.b16 %v76
    %v420 = vunpack.c.h.b16 %v76
    %v421 = vunpack.c.l.b16 %v77
    %v422 = vunpack.c.h.b16 %v77
    %v423 = vunpack.c.l.b16 %v78
    %v424 = vunpack.c.h.b16 %v78
    %v425 = vunpack.c.l.b16 %v79
    %v426 = vunpack.c.h.b16 %v79
    %v427 = vunpack.c.l.b16 %v80
    %v428 = vunpack.c.h.b16 %v80
    %v429 = vunpack.c.l.b16 %v81
    %v430 = vunpack.c.h.b16 %v81
    %v431 = vunpack.c.l.b16 %v82
    %v432 = vunpack.c.h.b16 %v82
    %v433 = vunpack.c.l.b16 %v83
    %v434 = vunpack.c.h.b16 %v83
    %v435 = vunpack.c.l.b16 %v84
    %v436 = vunpack.c.h.b16 %v84
    %v437 = vunpack.c.l.b16 %v85
    %v438 = vunpack.c.h.b16 %v85
    %v439 = vunpack.c.l.b16 %v86
    %v440 = vunpack.c.h.b16 %v86
    %v441 = vunpack.c.l.b16 %v87
    %v442 = vunpack.c.h.b16 %v87
    %v443 = vunpack.c.l.b16 %v88
    %v444 = vunpack.c.h.b16 %v88
    %v445 = vunpack.c.l.b16 %v89
    %v446 = vunpack.c.h.b16 %v89
    %v447 = vunpack.c.l.b16 %v90
    %v448 = vunpack.c.h.b16 %v90
    %v449 = vpack.c.b16 %v359, %v353
    %v450 = vpack.c.b16 %v360, %v354
    %v451 = vpack.c.b16 %v361, %v355
    %v452 = vpack.c.b16 %v362, %v356
    %v453 = vpack.c.b16 %v363, %v357
    %v454 = vpack.c.b16 %v364, %v358
    %v455 = vpack.c.b16 %v371, %v365
    %v456 = vpack.c.b16 %v372, %v366
    %v457 = vpack.c.b16 %v373, %v367
    %v458 = vpack.c.b16 %v374, %v368
    %v459 = vpack.c.b16 %v375, %v369
    %v460 = vpack.c.b16 %v376, %v370
    %v461 = vpack.c.b16 %v383, %v377
    %v462 = vpack.c.b16 %v384, %v378
    %v463 = vpack.c.b16 %v385, %v379
    %v464 = vpack.c.b16 %v386, %v380
    %v465 = vpack.c.b16 %v387, %v381
    %v466 = vpack.c.b16 %v388, %v382
    %v467 = vpack.c.b16 %v395, %v389
    %v468 = vpack.c.b16 %v396, %v390
    %v469 = vpack.c.b16 %v397, %v391
    %v470 = vpack.c.b16 %v398, %v392
    %v471 = vpack.c.b16 %v399, %v393
    %v472 = vpack.c.b16 %v400, %v394
    %v473 = vpack.c.b16 %v407, %v401
    %v474 = vpack.c.b16 %v408, %v402
    %v475 = vpack.c.b16 %v409, %v403
    %v476 = vpack.c.b16 %v410, %v404
    %v477 = vpack.c.b16 %v411, %v405
    %v478 = vpack.c.b16 %v412, %v406
    %v479 = vpack.c.b16 %v419, %v413
    %v480 = vpack.c.b16 %v420, %v414
    %v481 = vpack.c.b16 %v421, %v415
    %v482 = vpack.c.b16 %v422, %v416
    %v483 = vpack.c.b16 %v423, %v417
    %v484 = vpack.c.b16 %v424, %v418
    %v485 = vpack.c.b16 %v431, %v425
    %v486 = vpack.c.b16 %v432, %v426
    %v487 = vpack.c.b16 %v433, %v427
    %v488 = vpack.c.b16 %v434, %v428
    %v489 = vpack.c.b16 %v435, %v429
    %v490 = vpack.c.b16 %v436, %v430
    %v491 = vpack.c.b16 %v443, %v437
    %v492 = vpack.c.b16 %v444, %v438
    %v493 = vpack.c.b16 %v445, %v439
    %v494 = vpack.c.b16 %v446, %v440
    %v495 = vpack.c.b16 %v447, %v441
    %v496 = vpack.c.b16 %v448, %v442
    %v737 = vunpack.c.l.b16 %v91
    %v738 = vunpack.c.h.b16 %v91
    %v739 = vunpack.c.l.b16 %v92
    %v740 = vunpack.c.h.b16 %v92
    %v741 = vunpack.c.l.b16 %v93
    %v742 = vunpack.c.h.b16 %v93
    %v743 = vunpack.c.l.b16 %v94
    %v744 = vunpack.c.h.b16 %v94
    %v745 = vunpack.c.l.b16 %v95
    %v746 = vunpack.c.h.b16 %v95
    %v747 = vunpack.c.l.b16 %v96
    %v748 = vunpack.c.h.b16 %v96
    %v749 = vunpack.c.l.b16 %v97
    %v750 = vunpack.c.h.b16 %v97
    %v751 = vunpack.c.l.b16 %v98
    %v752 = vunpack.c.h.b16 %v98
    %v753 = vunpack.c.l.b16 %v99
    %v754 = vunpack.c.h.b16 %v99
    %v755 = vunpack.c.l.b16 %v100
    %v756 = vunpack.c.h.b16 %v100
    %v757 = vunpack.c.l.b16 %v101
    %v758 = vunpack.c.h.b16 %v101
    %v759 = vunpack.c.l.b16 %v102
    %v760 = vunpack.c.h.b16 %v102
    %v761 = vunpack.c.l.b16 %v103
    %v762 = vunpack.c.h.b16 %v103
    %v763 = vunpack.c.l.b16 %v104
    %v764 = vunpack.c.h.b16 %v104
    %v765 = vunpack.c.l.b16 %v105
    %v766 = vunpack.c.h.b16 %v105
    %v767 = vunpack.c.l.b16 %v106
    %v768 = vunpack.c.h.b16 %v106
    %v769 = vunpack.c.l.b16 %v107
    %v770 = vunpack.c.h.b16 %v107
    %v771 = vunpack.c.l.b16 %v108
    %v772 = vunpack.c.h.b16 %v108
    %v773 = vunpack.c.l.b16 %v109
    %v774 = vunpack.c.h.b16 %v109
    %v775 = vunpack.c.l.b16 %v110
    %v776 = vunpack.c.h.b16 %v110
    %v777 = vunpack.c.l.b16 %v111
    %v778 = vunpack.c.h.b16 %v111
    %v779 = vunpack.c.l.b16 %v112
    %v780 = vunpack.c.h.b16 %v112
    %v781 = vunpack.c.l.b16 %v113
    %v782 = vunpack.c.h.b16 %v113
    %v783 = vunpack.c.l.b16 %v114
    %v784 = vunpack.c.h.b16 %v114
    %v785 = vunpack.c.l.b16 %v115
    %v786 = vunpack.c.h.b16 %v115
    %v787 = vunpack.c.l.b16 %v116
    %v788 = vunpack.c.h.b16 %v116
    %v789 = vunpack.c.l.b16 %v117
    %v790 = vunpack.c.h.b16 %v117
    %v791 = vunpack.c.l.b16 %v118
    %v792 = vunpack.c.h.b16 %v118
    %v793 = vunpack.c.l.b16 %v119
    %v794 = vunpack.c.h.b16 %v119
    %v795 = vunpack.c.l.b16 %v120
    %v796 = vunpack.c.h.b16 %v120
    %v797 = vunpack.c.l.b16 %v121
    %v798 = vunpack.c.h.b16 %v121
    %v799 = vunpack.c.l.b16 %v122
    %v800 = vunpack.c.h.b16 %v122
    %v801 = vunpack.c.l.b16 %v123
    %v802 = vunpack.c.h.b16 %v123
    %v803 = vunpack.c.l.b16 %v124
    %v804 = vunpack.c.h.b16 %v124
    %v805 = vunpack.c.l.b16 %v125
    %v806 = vunpack.c.h.b16 %v125
    %v807 = vunpack.c.l.b16 %v126
    %v808 = vunpack.c.h.b16 %v126
    %v809 = vunpack.c.l.b16 %v127
    %v810 = vunpack.c.h.b16 %v127
    %v811 = vunpack.c.l.b16 %v128
    %v812 = vunpack.c.h.b16 %v128
    %v813 = vunpack.c.l.b16 %v129
    %v814 = vunpack.c.h.b16 %v129
    %v815 = vunpack.c.l.b16 %v130
    %v816 = vunpack.c.h.b16 %v130
    %v817 = vunpack.c.l.b16 %v131
    %v818 = vunpack.c.h.b16 %v131
    %v819 = vunpack.c.l.b16 %v132
    %v820 = vunpack.c.h.b16 %v132
    %v821 = vunpack.c.l.b16 %v133
    %v822 = vunpack.c.h.b16 %v133
    %v823 = vunpack.c.l.b16 %v134
    %v824 = vunpack.c.h.b16 %v134
    %v825 = vunpack.c.l.b16 %v135
    %v826 = vunpack.c.h.b16 %v135
    %v827 = vunpack.c.l.b16 %v136
    %v828 = vunpack.c.h.b16 %v136
    %v829 = vunpack.c.l.b16 %v137
    %v830 = vunpack.c.h.b16 %v137
    %v831 = vunpack.c.l.b16 %v138
    %v832 = vunpack.c.h.b16 %v138
    %v833 = vunpack.c.l.b16 %v139
    %v834 = vunpack.c.h.b16 %v139
    %v835 = vunpack.c.l.b16 %v140
    %v836 = vunpack.c.h.b16 %v140
    %v837 = vunpack.c.l.b16 %v141
    %v838 = vunpack.c.h.b16 %v141
    %v839 = vunpack.c.l.b16 %v142
    %v840 = vunpack.c.h.b16 %v142
    %v841 = vunpack.c.l.b16 %v143
    %v842 = vunpack.c.h.b16 %v143
    %v843 = vunpack.c.l.b16 %v144
    %v844 = vunpack.c.h.b16 %v144
    %v845 = vunpack.c.l.b16 %v145
    %v846 = vunpack.c.h.b16 %v145
    %v847 = vunpack.c.l.b16 %v146
    %v848 = vunpack.c.h.b16 %v146
    %v849 = vunpack.c.l.b16 %v147
    %v850 = vunpack.c.h.b16 %v147
    %v851 = vunpack.c.l.b16 %v148
    %v852 = vunpack.c.h.b16 %v148
    %v853 = vunpack.c.l.b16 %v149
    %v854 = vunpack.c.h.b16 %v149
    %v855 = vunpack.c.l.b16 %v150
    %v856 = vunpack.c.h.b16 %v150
    %v857 = vunpack.c.l.b16 %v151
    %v858 = vunpack.c.h.b16 %v151
    %v859 = vunpack.c.l.b16 %v152
    %v860 = vunpack.c.h.b16 %v152
    %v861 = vunpack.c.l.b16 %v153
    %v862 = vunpack.c.h.b16 %v153
    %v863 = vunpack.c.l.b16 %v154
    %v864 = vunpack.c.h.b16 %v154
    %v865 = vunpack.c.l.b16 %v155
    %v866 = vunpack.c.h.b16 %v155
    %v867 = vunpack.c.l.b16 %v156
    %v868 = vunpack.c.h.b16 %v156
    %v869 = vunpack.c.l.b16 %v157
    %v870 = vunpack.c.h.b16 %v157
    %v871 = vunpack.c.l.b16 %v158
    %v872 = vunpack.c.h.b16 %v158
    %v873 = vunpack.c.l.b16 %v159
    %v874 = vunpack.c.h.b16 %v159
    %v875 = vunpack.c.l.b16 %v160
    %v876 = vunpack.c.h.b16 %v160
    %v877 = vunpack.c.l.b16 %v161
    %v878 = vunpack.c.h.b16 %v161
    %v879 = vunpack.c.l.b16 %v162
    %v880 = vunpack.c.h.b16 %v162
    %v881 = vunpack.c.l.b16 %v163
    %v882 = vunpack.c.h.b16 %v163
    %v883 = vunpack.c.l.b16 %v164
    %v884 = vunpack.c.h.b16 %v164
    %v885 = vunpack.c.l.b16 %v165
    %v886 = vunpack.c.h.b16 %v165
    %v887 = vunpack.c.l.b16 %v166
    %v888 = vunpack.c.h.b16 %v166
    %v889 = vunpack.c.l.b16 %v167
    %v890 = vunpack.c.h.b16 %v167
    %v891 = vunpack.c.l.b16 %v168
    %v892 = vunpack.c.h.b16 %v168
    %v893 = vunpack.c.l.b16 %v169
    %v894 = vunpack.c.h.b16 %v169
    %v895 = vunpack.c.l.b16 %v170
    %v896 = vunpack.c.h.b16 %v170
    %v897 = vunpack.c.l.b16 %v171
    %v898 = vunpack.c.h.b16 %v171
    %v899 = vunpack.c.l.b16 %v172
    %v900 = vunpack.c.h.b16 %v172
    %v901 = vunpack.c.l.b16 %v173
    %v902 = vunpack.c.h.b16 %v173
    %v903 = vunpack.c.l.b16 %v174
    %v904 = vunpack.c.h.b16 %v174
    %v905 = vunpack.c.l.b16 %v175
    %v906 = vunpack.c.h.b16 %v175
    %v907 = vunpack.c.l.b16 %v176
    %v908 = vunpack.c.h.b16 %v176
    %v909 = vunpack.c.l.b16 %v177
    %v910 = vunpack.c.h.b16 %v177
    %v911 = vunpack.c.l.b16 %v178
    %v912 = vunpack.c.h.b16 %v178
    %v913 = vunpack.c.l.b16 %v179
    %v914 = vunpack.c.h.b16 %v179
    %v915 = vunpack.c.l.b16 %v180
    %v916 = vunpack.c.h.b16 %v180
    %v917 = vunpack.c.l.b16 %v181
    %v918 = vunpack.c.h.b16 %v181
    %v919 = vunpack.c.l.b16 %v182
    %v920 = vunpack.c.h.b16 %v182
    %v921 = vunpack.c.l.b16 %v183
    %v922 = vunpack.c.h.b16 %v183
    %v923 = vunpack.c.l.b16 %v184
    %v924 = vunpack.c.h.b16 %v184
    %v925 = vunpack.c.l.b16 %v185
    %v926 = vunpack.c.h.b16 %v185
    %v927 = vunpack.c.l.b16 %v186
    %v928 = vunpack.c.h.b16 %v186
    %v929 = vunpack.c.l.b16 %v187
    %v930 = vunpack.c.h.b16 %v187
    %v931 = vunpack.c.l.b16 %v188
    %v932 = vunpack.c.h.b16 %v188
    %v933 = vunpack.c.l.b16 %v189
    %v934 = vunpack.c.h.b16 %v189
    %v935 = vunpack.c.l.b16 %v190
    %v936 = vunpack.c.h.b16 %v190
    %v937 = vunpack.c.l.b16 %v191
    %v938 = vunpack.c.h.b16 %v191
    %v939 = vunpack.c.l.b16 %v192
    %v940 = vunpack.c.h.b16 %v192
    %v941 = vunpack.c.l.b16 %v193
    %v942 = vunpack.c.h.b16 %v193
    %v943 = vunpack.c.l.b16 %v194
    %v944 = vunpack.c.h.b16 %v194
    %v945 = vunpack.c.l.b16 %v195
    %v946 = vunpack.c.h.b16 %v195
    %v947 = vunpack.c.l.b16 %v196
    %v948 = vunpack.c.h.b16 %v196
    %v949 = vunpack.c.l.b16 %v197
    %v950 = vunpack.c.h.b16 %v197
    %v951 = vunpack.c.l.b16 %v198
    %v952 = vunpack.c.h.b16 %v198
    %v953 = vunpack.c.l.b16 %v199
    %v954 = vunpack.c.h.b16 %v199
    %v955 = vunpack.c.l.b16 %v200
    %v956 = vunpack.c.h.b16 %v200
    %v957 = vunpack.c.l.b16 %v201
    %v958 = vunpack.c.h.b16 %v201
    %v959 = vunpack.c.l.b16 %v202
    %v960 = vunpack.c.h.b16 %v202
    %v961 = vunpack.c.l.b16 %v203
    %v962 = vunpack.c.h.b16 %v203
    %v963 = vunpack.c.l.b16 %v204
    %v964 = vunpack.c.h.b16 %v204
    %v965 = vunpack.c.l.b16 %v205
    %v966 = vunpack.c.h.b16 %v205
    %v967 = vunpack.c.l.b16 %v206
    %v968 = vunpack.c.h.b16 %v206
    %v969 = vunpack.c.l.b16 %v207
    %v970 = vunpack.c.h.b16 %v207
    %v971 = vunpack.c.l.b16 %v208
    %v972 = vunpack.c.h.b16 %v208
    %v973 = vunpack.c.l.b16 %v209
    %v974 = vunpack.c.h.b16 %v209
    %v975 = vunpack.c.l.b16 %v210
    %v976 = vunpack.c.h.b16 %v210
    %v977 = vunpack.c.l.b16 %v211
    %v978 = vunpack.c.h.b16 %v211
    %v979 = vunpack.c.l.b16 %v212
    %v980 = vunpack.c.h.b16 %v212
    %v981 = vunpack.c.l.b16 %v213
    %v982 = vunpack.c.h.b16 %v213
    %v983 = vunpack.c.l.b16 %v214
    %v984 = vunpack.c.h.b16 %v214
    %v985 = vunpack.c.l.b16 %v215
    %v986 = vunpack.c.h.b16 %v215
    %v987 = vunpack.c.l.b16 %v216
    %v988 = vunpack.c.h.b16 %v216
    %v989 = vunpack.c.l.b16 %v217
    %v990 = vunpack.c.h.b16 %v217
    %v991 = vunpack.c.l.b16 %v218
    %v992 = vunpack.c.h.b16 %v218
    %v993 = vunpack.c.l.b16 %v219
    %v994 = vunpack.c.h.b16 %v219
    %v995 = vunpack.c.l.b16 %v220
    %v996 = vunpack.c.h.b16 %v220
    %v997 = vunpack.c.l.b16 %v221
    %v998 = vunpack.c.h.b16 %v221
    %v999 = vunpack.c.l.b16 %v222
    %v1000 = vunpack.c.h.b16 %v222
    %v1001 = vunpack.c.l.b16 %v223
    %v1002 = vunpack.c.h.b16 %v223
    %v1003 = vunpack.c.l.b16 %v224
    %v1004 = vunpack.c.h.b16 %v224
    %v1005 = vunpack.c.l.b16 %v225
    %v1006 = vunpack.c.h.b16 %v225
    %v1007 = vunpack.c.l.b16 %v226
    %v1008 = vunpack.c.h.b16 %v226
    %v1009 = vunpack.c.l.b16 %v227
    %v1010 = vunpack.c.h.b16 %v227
    %v1011 = vunpack.c.l.b16 %v228
    %v1012 = vunpack.c.h.b16 %v228
    %v1013 = vunpack.c.l.b16 %v229
    %v1014 = vunpack.c.h.b16 %v229
    %v1015 = vunpack.c.l.b16 %v230
    %v1016 = vunpack.c.h.b16 %v230
    %v1017 = vunpack.c.l.b16 %v231
    %v1018 = vunpack.c.h.b16 %v231
    %v1019 = vunpack.c.l.b16 %v232
    %v1020 = vunpack.c.h.b16 %v232
    %v1021 = vunpack.c.l.b16 %v233
    %v1022 = vunpack.c.h.b16 %v233
    %v1023 = vunpack.c.l.b16 %v234
    %v1024 = vunpack.c.h.b16 %v234
    %v1025 = vunpack.c.l.b16 %v235
    %v1026 = vunpack.c.h.b16 %v235
    %v1027 = vunpack.c.l.b16 %v236
    %v1028 = vunpack.c.h.b16 %v236
    %v1029 = vunpack.c.l.b16 %v237
    %v1030 = vunpack.c.h.b16 %v237
    %v1031 = vunpack.c.l.b16 %v238
    %v1032 = vunpack.c.h.b16 %v238
    %v1033 = vunpack.c.l.b16 %v239
    %v1034 = vunpack.c.h.b16 %v239
    %v1035 = vunpack.c.l.b16 %v240
    %v1036 = vunpack.c.h.b16 %v240
    %v1037 = vunpack.c.l.b16 %v241
    %v1038 = vunpack.c.h.b16 %v241
    %v1039 = vunpack.c.l.b16 %v242
    %v1040 = vunpack.c.h.b16 %v242
    %v1041 = vunpack.c.l.b16 %v243
    %v1042 = vunpack.c.h.b16 %v243
    %v1043 = vunpack.c.l.b16 %v244
    %v1044 = vunpack.c.h.b16 %v244
    %v1045 = vunpack.c.l.b16 %v245
    %v1046 = vunpack.c.h.b16 %v245
    %v1047 = vunpack.c.l.b16 %v246
    %v1048 = vunpack.c.h.b16 %v246
    %v1049 = vunpack.c.l.b16 %v247
    %v1050 = vunpack.c.h.b16 %v247
    %v1051 = vunpack.c.l.b16 %v248
    %v1052 = vunpack.c.h.b16 %v248
    %v1053 = vunpack.c.l.b16 %v249
    %v1054 = vunpack.c.h.b16 %v249
    %v1055 = vunpack.c.l.b16 %v250
    %v1056 = vunpack.c.h.b16 %v250
    %v1057 = vunpack.c.l.b16 %v251
    %v1058 = vunpack.c.h.b16 %v251
    %v1059 = vunpack.c.l.b16 %v252
    %v1060 = vunpack.c.h.b16 %v252
    %v1061 = vunpack.c.l.b16 %v253
    %v1062 = vunpack.c.h.b16 %v253
    %v1063 = vunpack.c.l.b16 %v254
    %v1064 = vunpack.c.h.b16 %v254
    %v1065 = vunpack.c.l.b16 %v255
    %v1066 = vunpack.c.h.b16 %v255
    %v1067 = vunpack.c.l.b16 %v256
    %v1068 = vunpack.c.h.b16 %v256
    %v1069 = vunpack.c.l.b16 %v257
    %v1070 = vunpack.c.h.b16 %v257
    %v1071 = vunpack.c.l.b16 %v258
    %v1072 = vunpack.c.h.b16 %v258
    %v1073 = vunpack.c.l.b16 %v259
    %v1074 = vunpack.c.h.b16 %v259
    %v1075 = vunpack.c.l.b16 %v260
    %v1076 = vunpack.c.h.b16 %v260
    %v1077 = vunpack.c.l.b16 %v261
    %v1078 = vunpack.c.h.b16 %v261
    %v1079 = vunpack.c.l.b16 %v262
    %v1080 = vunpack.c.h.b16 %v262
    %v1081 = vunpack.c.l.b16 %v263
    %v1082 = vunpack.c.h.b16 %v263
    %v1083 = vunpack.c.l.b16 %v264
    %v1084 = vunpack.c.h.b16 %v264
    %v1085 = vunpack.c.l.b16 %v265
    %v1086 = vunpack.c.h.b16 %v265
    %v1087 = vunpack.c.l.b16 %v266
    %v1088 = vunpack.c.h.b16 %v266
    %v1089 = vunpack.c.l.b16 %v267
    %v1090 = vunpack.c.h.b16 %v267
    %v1091 = vunpack.c.l.b16 %v268
    %v1092 = vunpack.c.h.b16 %v268
    %v1093 = vunpack.c.l.b16 %v269
    %v1094 = vunpack.c.h.b16 %v269
    %v1095 = vunpack.c.l.b16 %v270
    %v1096 = vunpack.c.h.b16 %v270
    %v1097 = vunpack.c.l.b16 %v271
    %v1098 = vunpack.c.h.b16 %v271
    %v1099 = vunpack.c.l.b16 %v272
    %v1100 = vunpack.c.h.b16 %v272
    %v1101 = vunpack.c.l.b16 %v273
    %v1102 = vunpack.c.h.b16 %v273
    %v1103 = vunpack.c.l.b16 %v274
    %v1104 = vunpack.c.h.b16 %v274
    %v1105 = vunpack.c.l.b16 %v275
    %v1106 = vunpack.c.h.b16 %v275
    %v1107 = vunpack.c.l.b16 %v276
    %v1108 = vunpack.c.h.b16 %v276
    %v1109 = vunpack.c.l.b16 %v277
    %v1110 = vunpack.c.h.b16 %v277
    %v1111 = vunpack.c.l.b16 %v278
    %v1112 = vunpack.c.h.b16 %v278
    %v1113 = vunpack.c.l.b16 %v279
    %v1114 = vunpack.c.h.b16 %v279
    %v1115 = vunpack.c.l.b16 %v280
    %v1116 = vunpack.c.h.b16 %v280
    %v1117 = vunpack.c.l.b16 %v281
    %v1118 = vunpack.c.h.b16 %v281
    %v1119 = vunpack.c.l.b16 %v282
    %v1120 = vunpack.c.h.b16 %v282
    %v1121 = vpack.c.b16 %v741, %v737
    %v1122 = vpack.c.b16 %v742, %v738
    %v1123 = vpack.c.b16 %v743, %v739
    %v1124 = vpack.c.b16 %v744, %v740
    %v1125 = vpack.c.b16 %v749, %v745
    %v1126 = vpack.c.b16 %v750, %v746
    %v1127 = vpack.c.b16 %v751, %v747
    %v1128 = vpack.c.b16 %v752, %v748
    %v1129 = vpack.c.b16 %v757, %v753
    %v1130 = vpack.c.b16 %v758, %v754
    %v1131 = vpack.c.b16 %v759, %v755
    %v1132 = vpack.c.b16 %v760, %v756
    %v1133 = vpack.c.b16 %v765, %v761
    %v1134 = vpack.c.b16 %v766, %v762
    %v1135 = vpack.c.b16 %v767, %v763
    %v1136 = vpack.c.b16 %v768, %v764
    %v1137 = vpack.c.b16 %v773, %v769
    %v1138 = vpack.c.b16 %v774, %v770
    %v1139 = vpack.c.b16 %v775, %v771
    %v1140 = vpack.c.b16 %v776, %v772
    %v1141 = vpack.c.b16 %v781, %v777
    %v1142 = vpack.c.b16 %v782, %v778
    %v1143 = vpack.c.b16 %v783, %v779
    %v1144 = vpack.c.b16 %v784, %v780
    %v1145 = vpack.c.b16 %v789, %v785
    %v1146 = vpack.c.b16 %v790, %v786
    %v1147 = vpack.c.b16 %v791, %v787
    %v1148 = vpack.c.b16 %v792, %v788
    %v1149 = vpack.c.b16 %v797, %v793
    %v1150 = vpack.c.b16 %v798, %v794
    %v1151 = vpack.c.b16 %v799, %v795
    %v1152 = vpack.c.b16 %v800, %v796
    %v1153 = vpack.c.b16 %v805, %v801
    %v1154 = vpack.c.b16 %v806, %v802
    %v1155 = vpack.c.b16 %v807, %v803
    %v1156 = vpack.c.b16 %v808, %v804
    %v1157 = vpack.c.b16 %v813, %v809
    %v1158 = vpack.c.b16 %v814, %v810
    %v1159 = vpack.c.b16 %v815, %v811
    %v1160 = vpack.c.b16 %v816, %v812
    %v1161 = vpack.c.b16 %v821, %v817
    %v1162 = vpack.c.b16 %v822, %v818
    %v1163 = vpack.c.b16 %v823, %v819
    %v1164 = vpack.c.b16 %v824, %v820
    %v1165 = vpack.c.b16 %v829, %v825
    %v1166 = vpack.c.b16 %v830, %v826
    %v1167 = vpack.c.b16 %v831, %v827
    %v1168 = vpack.c.b16 %v832, %v828
    %v1169 = vpack.c.b16 %v837, %v833
    %v1170 = vpack.c.b16 %v838, %v834
    %v1171 = vpack.c.b16 %v839, %v835
    %v1172 = vpack.c.b16 %v840, %v836
    %v1173 = vpack.c.b16 %v845, %v841
    %v1174 = vpack.c.b16 %v846, %v842
    %v1175 = vpack.c.b16 %v847, %v843
    %v1176 = vpack.c.b16 %v848, %v844
    %v1177 = vpack.c.b16 %v853, %v849
    %v1178 = vpack.c.b16 %v854, %v850
    %v1179 = vpack.c.b16 %v855, %v851
    %v1180 = vpack.c.b16 %v856, %v852
    %v1181 = vpack.c.b16 %v861, %v857
    %v1182 = vpack.c.b16 %v862, %v858
    %v1183 = vpack.c.b16 %v863, %v859
    %v1184 = vpack.c.b16 %v864, %v860
    %v1185 = vpack.c.b16 %v869, %v865
    %v1186 = vpack.c.b16 %v870, %v866
    %v1187 = vpack.c.b16 %v871, %v867
    %v1188 = vpack.c.b16 %v872, %v868
    %v1189 = vpack.c.b16 %v877, %v873
    %v1190 = vpack.c.b16 %v878, %v874
    %v1191 = vpack.c.b16 %v879, %v875
    %v1192 = vpack.c.b16 %v880, %v876
    %v1193 = vpack.c.b16 %v885, %v881
    %v1194 = vpack.c.b16 %v886, %v882
    %v1195 = vpack.c.b16 %v887, %v883
    %v1196 = vpack.c.b16 %v888, %v884
    %v1197 = vpack.c.b16 %v893, %v889
    %v1198 = vpack.c.b16 %v894, %v890
    %v1199 = vpack.c.b16 %v895, %v891
    %v1200 = vpack.c.b16 %v896, %v892
    %v1201 = vpack.c.b16 %v901, %v897
    %v1202 = vpack.c.b16 %v902, %v898
    %v1203 = vpack.c.b16 %v903, %v899
    %v1204 = vpack.c.b16 %v904, %v900
    %v1205 = vpack.c.b16 %v909, %v905
    %v1206 = vpack.c.b16 %v910, %v906
    %v1207 = vpack.c.b16 %v911, %v907
    %v1208 = vpack.c.b16 %v912, %v908
    %v1209 = vpack.c.b16 %v917, %v913
    %v1210 = vpack.c.b16 %v918, %v914
    %v1211 = vpack.c.b16 %v919, %v915
    %v1212 = vpack.c.b16 %v920, %v916
    %v1213 = vpack.c.b16 %v925, %v921
    %v1214 = vpack.c.b16 %v926, %v922
    %v1215 = vpack.c.b16 %v927, %v923
    %v1216 = vpack.c.b16 %v928, %v924
    %v1217 = vpack.c.b16 %v933, %v929
    %v1218 = vpack.c.b16 %v934, %v930
    %v1219 = vpack.c.b16 %v935, %v931
    %v1220 = vpack.c.b16 %v936, %v932
    %v1221 = vpack.c.b16 %v941, %v937
    %v1222 = vpack.c.b16 %v942, %v938
    %v1223 = vpack.c.b16 %v943, %v939
    %v1224 = vpack.c.b16 %v944, %v940
    %v1225 = vpack.c.b16 %v949, %v945
    %v1226 = vpack.c.b16 %v950, %v946
    %v1227 = vpack.c.b16 %v951, %v947
    %v1228 = vpack.c.b16 %v952, %v948
    %v1229 = vpack.c.b16 %v957, %v953
    %v1230 = vpack.c.b16 %v958, %v954
    %v1231 = vpack.c.b16 %v959, %v955
    %v1232 = vpack.c.b16 %v960, %v956
    %v1233 = vpack.c.b16 %v965, %v961
    %v1234 = vpack.c.b16 %v966, %v962
    %v1235 = vpack.c.b16 %v967, %v963
    %v1236 = vpack.c.b16 %v968, %v964
    %v1237 = vpack.c.b16 %v973, %v969
    %v1238 = vpack.c.b16 %v974, %v970
    %v1239 = vpack.c.b16 %v975, %v971
    %v1240 = vpack.c.b16 %v976, %v972
    %v1241 = vpack.c.b16 %v981, %v977
    %v1242 = vpack.c.b16 %v982, %v978
    %v1243 = vpack.c.b16 %v983, %v979
    %v1244 = vpack.c.b16 %v984, %v980
    %v1245 = vpack.c.b16 %v989, %v985
    %v1246 = vpack.c.b16 %v990, %v986
    %v1247 = vpack.c.b16 %v991, %v987
    %v1248 = vpack.c.b16 %v992, %v988
    %v1249 = vpack.c.b16 %v997, %v993
    %v1250 = vpack.c.b16 %v998, %v994
    %v1251 = vpack.c.b16 %v999, %v995
    %v1252 = vpack.c.b16 %v1000, %v996
    %v1253 = vpack.c.b16 %v1005, %v1001
    %v1254 = vpack.c.b16 %v1006, %v1002
    %v1255 = vpack.c.b16 %v1007, %v1003
    %v1256 = vpack.c.b16 %v1008, %v1004
    %v1257 = vpack.c.b16 %v1013, %v1009
    %v1258 = vpack.c.b16 %v1014, %v1010
    %v1259 = vpack.c.b16 %v1015, %v1011
    %v1260 = vpack.c.b16 %v1016, %v1012
    %v1261 = vpack.c.b16 %v1021, %v1017
    %v1262 = vpack.c.b16 %v1022, %v1018
    %v1263 = vpack.c.b16 %v1023, %v1019
    %v1264 = vpack.c.b16 %v1024, %v1020
    %v1265 = vpack.c.b16 %v1029, %v1025
    %v1266 = vpack.c.b16 %v1030, %v1026
    %v1267 = vpack.c.b16 %v1031, %v1027
    %v1268 = vpack.c.b16 %v1032, %v1028
    %v1269 = vpack.c.b16 %v1037, %v1033
    %v1270 = vpack.c.b16 %v1038, %v1034
    %v1271 = vpack.c.b16 %v1039, %v1035
    %v1272 = vpack.c.b16 %v1040, %v1036
    %v1273 = vpack.c.b16 %v1045, %v1041
    %v1274 = vpack.c.b16 %v1046, %v1042
    %v1275 = vpack.c.b16 %v1047, %v1043
    %v1276 = vpack.c.b16 %v1048, %v1044
    %v1277 = vpack.c.b16 %v1053, %v1049
    %v1278 = vpack.c.b16 %v1054, %v1050
    %v1279 = vpack.c.b16 %v1055, %v1051
    %v1280 = vpack.c.b16 %v1056, %v1052
    %v1281 = vpack.c.b16 %v1061, %v1057
    %v1282 = vpack.c.b16 %v1062, %v1058
    %v1283 = vpack.c.b16 %v1063, %v1059
    %v1284 = vpack.c.b16 %v1064, %v1060
    %v1285 = vpack.c.b16 %v1069, %v1065
    %v1286 = vpack.c.b16 %v1070, %v1066
    %v1287 = vpack.c.b16 %v1071, %v1067
    %v1288 = vpack.c.b16 %v1072, %v1068
    %v1289 = vpack.c.b16 %v1077, %v1073
    %v1290 = vpack.c.b16 %v1078, %v1074
    %v1291 = vpack.c.b16 %v1079, %v1075
    %v1292 = vpack.c.b16 %v1080, %v1076
    %v1293 = vpack.c.b16 %v1085, %v1081
    %v1294 = vpack.c.b16 %v1086, %v1082
    %v1295 = vpack.c.b16 %v1087, %v1083
    %v1296 = vpack.c.b16 %v1088, %v1084
    %v1297 = vpack.c.b16 %v1093, %v1089
    %v1298 = vpack.c.b16 %v1094, %v1090
    %v1299 = vpack.c.b16 %v1095, %v1091
    %v1300 = vpack.c.b16 %v1096, %v1092
    %v1301 = vpack.c.b16 %v1101, %v1097
    %v1302 = vpack.c.b16 %v1102, %v1098
    %v1303 = vpack.c.b16 %v1103, %v1099
    %v1304 = vpack.c.b16 %v1104, %v1100
    %v1305 = vpack.c.b16 %v1109, %v1105
    %v1306 = vpack.c.b16 %v1110, %v1106
    %v1307 = vpack.c.b16 %v1111, %v1107
    %v1308 = vpack.c.b16 %v1112, %v1108
    %v1309 = vpack.c.b16 %v1117, %v1113
    %v1310 = vpack.c.b16 %v1118, %v1114
    %v1311 = vpack.c.b16 %v1119, %v1115
    %v1312 = vpack.c.b16 %v1120, %v1116
    %1505 = vmatprep.subr.bf16.mxu0 %v1122
    %1506 = vmatpush1.bf16.msra.mxu0 %v1121
    %1507 = vmatprep.subr.bf16.mxu0 %v1126
    %1508 = vmatpush1.bf16.msra.mxu0 %v1125
    %1509 = vmatprep.subr.bf16.mxu0 %v1130
    %1510 = vmatpush1.bf16.msra.mxu0 %v1129
    %1511 = vmatprep.subr.bf16.mxu0 %v1134
    %1512 = vmatpush1.bf16.msra.mxu0 %v1133
    %1513 = vmatprep.subr.bf16.mxu0 %v1138
    %1514 = vmatpush1.bf16.msra.mxu0 %v1137
    %1515 = vmatprep.subr.bf16.mxu0 %v1142
    %1516 = vmatpush1.bf16.msra.mxu0 %v1141
    %1517 = vmatprep.subr.bf16.mxu0 %v1146
    %1518 = vmatpush1.bf16.msra.mxu0 %v1145
    %1519 = vmatprep.subr.bf16.mxu0 %v1150
    %1520 = vmatpush1.bf16.msra.mxu0 %v1149
    %1521 = vmatprep.subr.bf16.mxu0 %v1154
    %1522 = vmatpush1.bf16.msra.mxu0 %v1153
    %1523 = vmatprep.subr.bf16.mxu0 %v1158
    %1524 = vmatpush1.bf16.msra.mxu0 %v1157
    %1525 = vmatprep.subr.bf16.mxu0 %v1162
    %1526 = vmatpush1.bf16.msra.mxu0 %v1161
    %1527 = vmatprep.subr.bf16.mxu0 %v1166
    %1528 = vmatpush1.bf16.msra.mxu0 %v1165
    %1529 = vmatprep.subr.bf16.mxu0 %v1170
    %1530 = vmatpush1.bf16.msra.mxu0 %v1169
    %1531 = vmatprep.subr.bf16.mxu0 %v1174
    %1532 = vmatpush1.bf16.msra.mxu0 %v1173
    %1533 = vmatprep.subr.bf16.mxu0 %v1178
    %1534 = vmatpush1.bf16.msra.mxu0 %v1177
    %1535 = vmatprep.subr.bf16.mxu0 %v1182
    %1536 = vmatpush1.bf16.msra.mxu0 %v1181
    %1537 = vmatprep.mubr.bf16.mxu0 %v450
    %1538 = vmatmul.mubr.bf16.gmra.mrb[0].mxu0 %v449
    %v1539 = vpop.f32.mrb[0].mxu0
    %v1540 = vadd.f32 %v288, %v1539
    %v1541 = vpop.f32.mrb[0].mxu0
    %v1542 = vadd.f32 %v292, %v1541
    %v1543 = vpop.f32.mrb[0].mxu0
    %v1544 = vadd.f32 %v288, %v1543
    %v1545 = vpop.f32.mrb[0].mxu0
    %v1546 = vadd.f32 %v292, %v1545
    %1547 = vmatprep.mubr.bf16.mxu0 %v456
    %1548 = vmatmul.mubr.bf16.gmra.mrb[0].mxu0 %v455
    %v1549 = vpop.f32.mrb[0].mxu0
    %v1550 = vadd.f32 %v288, %v1549
    %v1551 = vpop.f32.mrb[0].mxu0
    %v1552 = vadd.f32 %v292, %v1551
    %v1553 = vpop.f32.mrb[0].mxu0
    %v1554 = vadd.f32 %v288, %v1553
    %v1555 = vpop.f32.mrb[0].mxu0
    %v1556 = vadd.f32 %v292, %v1555
    %1557 = vmatprep.mubr.bf16.mxu0 %v462
    %1558 = vmatmul.mubr.bf16.gmra.mrb[0].mxu0 %v461
    %v1559 = vpop.f32.mrb[0].mxu0
    %v1560 = vadd.f32 %v288, %v1559
    %v1561 = vpop.f32.mrb[0].mxu0
    %v1562 = vadd.f32 %v292, %v1561
    %v1563 = vpop.f32.mrb[0].mxu0
    %v1564 = vadd.f32 %v288, %v1563
    %v1565 = vpop.f32.mrb[0].mxu0
    %v1566 = vadd.f32 %v292, %v1565
    %1567 = vmatprep.mubr.bf16.mxu0 %v468
    %1568 = vmatmul.mubr.bf16.gmra.mrb[0].mxu0 %v467
    %v1569 = vpop.f32.mrb[0].mxu0
    %v1570 = vadd.f32 %v288, %v1569
    %v1571 = vpop.f32.mrb[0].mxu0
    %v1572 = vadd.f32 %v292, %v1571
    %v1573 = vpop.f32.mrb[0].mxu0
    %v1574 = vadd.f32 %v288, %v1573
    %v1575 = vpop.f32.mrb[0].mxu0
    %v1576 = vadd.f32 %v292, %v1575
    %1577 = vmatprep.mubr.bf16.mxu0 %v474
    %1578 = vmatmul.mubr.bf16.gmra.mrb[0].mxu0 %v473
    %v1579 = vpop.f32.mrb[0].mxu0
    %v1580 = vadd.f32 %v288, %v1579
    %v1581 = vpop.f32.mrb[0].mxu0
    %v1582 = vadd.f32 %v292, %v1581
    %v1583 = vpop.f32.mrb[0].mxu0
    %v1584 = vadd.f32 %v288, %v1583
    %v1585 = vpop.f32.mrb[0].mxu0
    %v1586 = vadd.f32 %v292, %v1585
    %1587 = vmatprep.mubr.bf16.mxu0 %v480
    %1588 = vmatmul.mubr.bf16.gmra.mrb[0].mxu0 %v479
    %v1589 = vpop.f32.mrb[0].mxu0
    %v1590 = vadd.f32 %v288, %v1589
    %v1591 = vpop.f32.mrb[0].mxu0
    %v1592 = vadd.f32 %v292, %v1591
    %v1593 = vpop.f32.mrb[0].mxu0
    %v1594 = vadd.f32 %v288, %v1593
    %v1595 = vpop.f32.mrb[0].mxu0
    %v1596 = vadd.f32 %v292, %v1595
    %1597 = vmatprep.mubr.bf16.mxu0 %v486
    %1598 = vmatmul.mubr.bf16.gmra.mrb[0].mxu0 %v485
    %v1599 = vpop.f32.mrb[0].mxu0
    %v1600 = vadd.f32 %v288, %v1599
    %v1601 = vpop.f32.mrb[0].mxu0
    %v1602 = vadd.f32 %v292, %v1601
    %v1603 = vpop.f32.mrb[0].mxu0
    %v1604 = vadd.f32 %v288, %v1603
    %v1605 = vpop.f32.mrb[0].mxu0
    %v1606 = vadd.f32 %v292, %v1605
    %1607 = vmatprep.mubr.bf16.mxu0 %v492
    %1608 = vmatmul.mubr.bf16.gmra.mrb[0].mxu0 %v491
    %v1609 = vpop.f32.mrb[0].mxu0
    %v1610 = vadd.f32 %v288, %v1609
    %v1611 = vpop.f32.mrb[0].mxu0
    %v1612 = vadd.f32 %v292, %v1611
    %v1613 = vpop.f32.mrb[0].mxu0
    %v1614 = vadd.f32 %v288, %v1613
    %v1615 = vpop.f32.mrb[0].mxu0
    %v1616 = vadd.f32 %v292, %v1615
    %1617 = vdwg.mxu0
    %1618 = vmatprep.subr.bf16.mxu0 %v1186
    %1619 = vmatpush1.bf16.msra.mxu0 %v1185
    %1620 = vmatprep.subr.bf16.mxu0 %v1190
    %1621 = vmatpush1.bf16.msra.mxu0 %v1189
    %1622 = vmatprep.subr.bf16.mxu0 %v1194
    %1623 = vmatpush1.bf16.msra.mxu0 %v1193
    %1624 = vmatprep.subr.bf16.mxu0 %v1198
    %1625 = vmatpush1.bf16.msra.mxu0 %v1197
    %1626 = vmatprep.subr.bf16.mxu0 %v1202
    %1627 = vmatpush1.bf16.msra.mxu0 %v1201
    %1628 = vmatprep.subr.bf16.mxu0 %v1206
    %1629 = vmatpush1.bf16.msra.mxu0 %v1205
    %1630 = vmatprep.subr.bf16.mxu0 %v1210
    %1631 = vmatpush1.bf16.msra.mxu0 %v1209
    %1632 = vmatprep.subr.bf16.mxu0 %v1214
    %1633 = vmatpush1.bf16.msra.mxu0 %v1213
    %1634 = vmatprep.subr.bf16.mxu0 %v1218
    %1635 = vmatpush1.bf16.msra.mxu0 %v1217
    %1636 = vmatprep.subr.bf16.mxu0 %v1222
    %1637 = vmatpush1.bf16.msra.mxu0 %v1221
    %1638 = vmatprep.subr.bf16.mxu0 %v1226
    %1639 = vmatpush1.bf16.msra.mxu0 %v1225
    %1640 = vmatprep.subr.bf16.mxu0 %v1230
    %1641 = vmatpush1.bf16.msra.mxu0 %v1229
    %1642 = vmatprep.subr.bf16.mxu0 %v1234
    %1643 = vmatpush1.bf16.msra.mxu0 %v1233
    %1644 = vmatprep.subr.bf16.mxu0 %v1238
    %1645 = vmatpush1.bf16.msra.mxu0 %v1237
    %1646 = vmatprep.subr.bf16.mxu0 %v1242
    %1647 = vmatpush1.bf16.msra.mxu0 %v1241
    %1648 = vmatprep.subr.bf16.mxu0 %v1246
    %1649 = vmatpush1.bf16.msra.mxu0 %v1245
    %1650 = vmatprep.mubr.bf16.mxu0 %v452
    %1651 = vmatmul.mubr.bf16.gmra.mrb[0].mxu0 %v451
    %v1652 = vpop.f32.mrb[0].mxu0
    %v1653 = vadd.f32 %v1540, %v1652
    %v1654 = vpop.f32.mrb[0].mxu0
    %v1655 = vadd.f32 %v1542, %v1654
    %v1656 = vpop.f32.mrb[0].mxu0
    %v1657 = vadd.f32 %v1544, %v1656
    %v1658 = vpop.f32.mrb[0].mxu0
    %v1659 = vadd.f32 %v1546, %v1658
    %1660 = vmatprep.mubr.bf16.mxu0 %v458
    %1661 = vmatmul.mubr.bf16.gmra.mrb[0].mxu0 %v457
    %v1662 = vpop.f32.mrb[0].mxu0
    %v1663 = vadd.f32 %v1550, %v1662
    %v1664 = vpop.f32.mrb[0].mxu0
    %v1665 = vadd.f32 %v1552, %v1664
    %v1666 = vpop.f32.mrb[0].mxu0
    %v1667 = vadd.f32 %v1554, %v1666
    %v1668 = vpop.f32.mrb[0].mxu0
    %v1669 = vadd.f32 %v1556, %v1668
    %1670 = vmatprep.mubr.bf16.mxu0 %v464
    %1671 = vmatmul.mubr.bf16.gmra.mrb[0].mxu0 %v463
    %v1672 = vpop.f32.mrb[0].mxu0
    %v1673 = vadd.f32 %v1560, %v1672
    %v1674 = vpop.f32.mrb[0].mxu0
    %v1675 = vadd.f32 %v1562, %v1674
    %v1676 = vpop.f32.mrb[0].mxu0
    %v1677 = vadd.f32 %v1564, %v1676
    %v1678 = vpop.f32.mrb[0].mxu0
    %v1679 = vadd.f32 %v1566, %v1678
    %1680 = vmatprep.mubr.bf16.mxu0 %v470
    %1681 = vmatmul.mubr.bf16.gmra.mrb[0].mxu0 %v469
    %v1682 = vpop.f32.mrb[0].mxu0
    %v1683 = vadd.f32 %v1570, %v1682
    %v1684 = vpop.f32.mrb[0].mxu0
    %v1685 = vadd.f32 %v1572, %v1684
    %v1686 = vpop.f32.mrb[0].mxu0
    %v1687 = vadd.f32 %v1574, %v1686
    %v1688 = vpop.f32.mrb[0].mxu0
    %v1689 = vadd.f32 %v1576, %v1688
    %1690 = vmatprep.mubr.bf16.mxu0 %v476
    %1691 = vmatmul.mubr.bf16.gmra.mrb[0].mxu0 %v475
    %v1692 = vpop.f32.mrb[0].mxu0
    %v1693 = vadd.f32 %v1580, %v1692
    %v1694 = vpop.f32.mrb[0].mxu0
    %v1695 = vadd.f32 %v1582, %v1694
    %v1696 = vpop.f32.mrb[0].mxu0
    %v1697 = vadd.f32 %v1584, %v1696
    %v1698 = vpop.f32.mrb[0].mxu0
    %v1699 = vadd.f32 %v1586, %v1698
    %1700 = vmatprep.mubr.bf16.mxu0 %v482
    %1701 = vmatmul.mubr.bf16.gmra.mrb[0].mxu0 %v481
    %v1702 = vpop.f32.mrb[0].mxu0
    %v1703 = vadd.f32 %v1590, %v1702
    %v1704 = vpop.f32.mrb[0].mxu0
    %v1705 = vadd.f32 %v1592, %v1704
    %v1706 = vpop.f32.mrb[0].mxu0
    %v1707 = vadd.f32 %v1594, %v1706
    %v1708 = vpop.f32.mrb[0].mxu0
    %v1709 = vadd.f32 %v1596, %v1708
    %1710 = vmatprep.mubr.bf16.mxu0 %v488
    %1711 = vmatmul.mubr.bf16.gmra.mrb[0].mxu0 %v487
    %v1712 = vpop.f32.mrb[0].mxu0
    %v1713 = vadd.f32 %v1600, %v1712
    %v1714 = vpop.f32.mrb[0].mxu0
    %v1715 = vadd.f32 %v1602, %v1714
    %v1716 = vpop.f32.mrb[0].mxu0
    %v1717 = vadd.f32 %v1604, %v1716
    %v1718 = vpop.f32.mrb[0].mxu0
    %v1719 = vadd.f32 %v1606, %v1718
    %1720 = vmatprep.mubr.bf16.mxu0 %v494
    %1721 = vmatmul.mubr.bf16.gmra.mrb[0].mxu0 %v493
    %v1722 = vpop.f32.mrb[0].mxu0
    %v1723 = vadd.f32 %v1610, %v1722
    %v1724 = vpop.f32.mrb[0].mxu0
    %v1725 = vadd.f32 %v1612, %v1724
    %v1726 = vpop.f32.mrb[0].mxu0
    %v1727 = vadd.f32 %v1614, %v1726
    %v1728 = vpop.f32.mrb[0].mxu0
    %v1729 = vadd.f32 %v1616, %v1728
    %1730 = vdwg.mxu0
    %1731 = vmatprep.subr.bf16.mxu0 %v1250
    %1732 = vmatpush1.bf16.msra.mxu0 %v1249
    %1733 = vmatprep.subr.bf16.mxu0 %v1254
    %1734 = vmatpush1.bf16.msra.mxu0 %v1253
    %1735 = vmatprep.subr.bf16.mxu0 %v1258
    %1736 = vmatpush1.bf16.msra.mxu0 %v1257
    %1737 = vmatprep.subr.bf16.mxu0 %v1262
    %1738 = vmatpush1.bf16.msra.mxu0 %v1261
    %1739 = vmatprep.subr.bf16.mxu0 %v1266
    %1740 = vmatpush1.bf16.msra.mxu0 %v1265
    %1741 = vmatprep.subr.bf16.mxu0 %v1270
    %1742 = vmatpush1.bf16.msra.mxu0 %v1269
    %1743 = vmatprep.subr.bf16.mxu0 %v1274
    %1744 = vmatpush1.bf16.msra.mxu0 %v1273
    %1745 = vmatprep.subr.bf16.mxu0 %v1278
    %1746 = vmatpush1.bf16.msra.mxu0 %v1277
    %1747 = vmatprep.subr.bf16.mxu0 %v1282
    %1748 = vmatpush1.bf16.msra.mxu0 %v1281
    %1749 = vmatprep.subr.bf16.mxu0 %v1286
    %1750 = vmatpush1.bf16.msra.mxu0 %v1285
    %1751 = vmatprep.subr.bf16.mxu0 %v1290
    %1752 = vmatpush1.bf16.msra.mxu0 %v1289
    %1753 = vmatprep.subr.bf16.mxu0 %v1294
    %1754 = vmatpush1.bf16.msra.mxu0 %v1293
    %1755 = vmatprep.subr.bf16.mxu0 %v1298
    %1756 = vmatpush1.bf16.msra.mxu0 %v1297
    %1757 = vmatprep.subr.bf16.mxu0 %v1302
    %1758 = vmatpush1.bf16.msra.mxu0 %v1301
    %1759 = vmatprep.subr.bf16.mxu0 %v1306
    %1760 = vmatpush1.bf16.msra.mxu0 %v1305
    %1761 = vmatprep.subr.bf16.mxu0 %v1310
    %1762 = vmatpush1.bf16.msra.mxu0 %v1309
    %1763 = vmatprep.mubr.bf16.mxu0 %v454
    %1764 = vmatmul.mubr.bf16.gmra.mrb[0].mxu0 %v453
    %v1765 = vpop.f32.mrb[0].mxu0
    %v1766 = vadd.f32 %v1653, %v1765
    %v1767 = vpop.f32.mrb[0].mxu0
    %v1768 = vadd.f32 %v1655, %v1767
    %v1769 = vpop.f32.mrb[0].mxu0
    %v1770 = vadd.f32 %v1657, %v1769
    %v1771 = vpop.f32.mrb[0].mxu0
    %v1772 = vadd.f32 %v1659, %v1771
    %1773 = vmatprep.mubr.bf16.mxu0 %v460
    %1774 = vmatmul.mubr.bf16.gmra.mrb[0].mxu0 %v459
    %v1775 = vpop.f32.mrb[0].mxu0
    %v1776 = vadd.f32 %v1663, %v1775
    %v1777 = vpop.f32.mrb[0].mxu0
    %v1778 = vadd.f32 %v1665, %v1777
    %v1779 = vpop.f32.mrb[0].mxu0
    %v1780 = vadd.f32 %v1667, %v1779
    %v1781 = vpop.f32.mrb[0].mxu0
    %v1782 = vadd.f32 %v1669, %v1781
    %1783 = vmatprep.mubr.bf16.mxu0 %v466
    %1784 = vmatmul.mubr.bf16.gmra.mrb[0].mxu0 %v465
    %v1785 = vpop.f32.mrb[0].mxu0
    %v1786 = vadd.f32 %v1673, %v1785
    %v1787 = vpop.f32.mrb[0].mxu0
    %v1788 = vadd.f32 %v1675, %v1787
    %v1789 = vpop.f32.mrb[0].mxu0
    %v1790 = vadd.f32 %v1677, %v1789
    %v1791 = vpop.f32.mrb[0].mxu0
    %v1792 = vadd.f32 %v1679, %v1791
    %1793 = vmatprep.mubr.bf16.mxu0 %v472
    %1794 = vmatmul.mubr.bf16.gmra.mrb[0].mxu0 %v471
    %v1795 = vpop.f32.mrb[0].mxu0
    %v1796 = vadd.f32 %v1683, %v1795
    %v1797 = vpop.f32.mrb[0].mxu0
    %v1798 = vadd.f32 %v1685, %v1797
    %v1799 = vpop.f32.mrb[0].mxu0
    %v1800 = vadd.f32 %v1687, %v1799
    %v1801 = vpop.f32.mrb[0].mxu0
    %v1802 = vadd.f32 %v1689, %v1801
    %1803 = vmatprep.mubr.bf16.mxu0 %v478
    %1804 = vmatmul.mubr.bf16.gmra.mrb[0].mxu0 %v477
    %v1805 = vpop.f32.mrb[0].mxu0
    %v1806 = vadd.f32 %v1693, %v1805
    %v1807 = vpop.f32.mrb[0].mxu0
    %v1808 = vadd.f32 %v1695, %v1807
    %v1809 = vpop.f32.mrb[0].mxu0
    %v1810 = vadd.f32 %v1697, %v1809
    %v1811 = vpop.f32.mrb[0].mxu0
    %v1812 = vadd.f32 %v1699, %v1811
    %1813 = vmatprep.mubr.bf16.mxu0 %v484
    %1814 = vmatmul.mubr.bf16.gmra.mrb[0].mxu0 %v483
    %v1815 = vpop.f32.mrb[0].mxu0
    %v1816 = vadd.f32 %v1703, %v1815
    %v1817 = vpop.f32.mrb[0].mxu0
    %v1818 = vadd.f32 %v1705, %v1817
    %v1819 = vpop.f32.mrb[0].mxu0
    %v1820 = vadd.f32 %v1707, %v1819
    %v1821 = vpop.f32.mrb[0].mxu0
    %v1822 = vadd.f32 %v1709, %v1821
    %1823 = vmatprep.mubr.bf16.mxu0 %v490
    %1824 = vmatmul.mubr.bf16.gmra.mrb[0].mxu0 %v489
    %v1825 = vpop.f32.mrb[0].mxu0
    %v1826 = vadd.f32 %v1713, %v1825
    %v1827 = vpop.f32.mrb[0].mxu0
    %v1828 = vadd.f32 %v1715, %v1827
    %v1829 = vpop.f32.mrb[0].mxu0
    %v1830 = vadd.f32 %v1717, %v1829
    %v1831 = vpop.f32.mrb[0].mxu0
    %v1832 = vadd.f32 %v1719, %v1831
    %1833 = vmatprep.mubr.bf16.mxu0 %v496
    %1834 = vmatmul.mubr.bf16.gmra.mrb[0].mxu0 %v495
    %v1835 = vpop.f32.mrb[0].mxu0
    %v1836 = vadd.f32 %v1723, %v1835
    %v1837 = vpop.f32.mrb[0].mxu0
    %v1838 = vadd.f32 %v1725, %v1837
    %v1839 = vpop.f32.mrb[0].mxu0
    %v1840 = vadd.f32 %v1727, %v1839
    %v1841 = vpop.f32.mrb[0].mxu0
    %v1842 = vadd.f32 %v1729, %v1841
    %1843 = vdwg.mxu0
    %1844 = vmatprep.subr.bf16.mxu0 %v1124
    %1845 = vmatpush1.bf16.msra.mxu0 %v1123
    %1846 = vmatprep.subr.bf16.mxu0 %v1128
    %1847 = vmatpush1.bf16.msra.mxu0 %v1127
    %1848 = vmatprep.subr.bf16.mxu0 %v1132
    %1849 = vmatpush1.bf16.msra.mxu0 %v1131
    %1850 = vmatprep.subr.bf16.mxu0 %v1136
    %1851 = vmatpush1.bf16.msra.mxu0 %v1135
    %1852 = vmatprep.subr.bf16.mxu0 %v1140
    %1853 = vmatpush1.bf16.msra.mxu0 %v1139
    %1854 = vmatprep.subr.bf16.mxu0 %v1144
    %1855 = vmatpush1.bf16.msra.mxu0 %v1143
    %1856 = vmatprep.subr.bf16.mxu0 %v1148
    %1857 = vmatpush1.bf16.msra.mxu0 %v1147
    %1858 = vmatprep.subr.bf16.mxu0 %v1152
    %1859 = vmatpush1.bf16.msra.mxu0 %v1151
    %1860 = vmatprep.subr.bf16.mxu0 %v1156
    %1861 = vmatpush1.bf16.msra.mxu0 %v1155
    %1862 = vmatprep.subr.bf16.mxu0 %v1160
    %1863 = vmatpush1.bf16.msra.mxu0 %v1159
    %1864 = vmatprep.subr.bf16.mxu0 %v1164
    %1865 = vmatpush1.bf16.msra.mxu0 %v1163
    %1866 = vmatprep.subr.bf16.mxu0 %v1168
    %1867 = vmatpush1.bf16.msra.mxu0 %v1167
    %1868 = vmatprep.subr.bf16.mxu0 %v1172
    %1869 = vmatpush1.bf16.msra.mxu0 %v1171
    %1870 = vmatprep.subr.bf16.mxu0 %v1176
    %1871 = vmatpush1.bf16.msra.mxu0 %v1175
    %1872 = vmatprep.subr.bf16.mxu0 %v1180
    %1873 = vmatpush1.bf16.msra.mxu0 %v1179
    %1874 = vmatprep.subr.bf16.mxu0 %v1184
    %1875 = vmatpush1.bf16.msra.mxu0 %v1183
    %1876 = vmatprep.mubr.bf16.mxu0 %v450
    %1877 = vmatmul.mubr.bf16.gmra.mrb[0].mxu0 %v449
    %v1878 = vpop.f32.mrb[0].mxu0
    %v1879 = vadd.f32 %v296, %v1878
    %v1880 = vpop.f32.mrb[0].mxu0
    %v1881 = vadd.f32 %v300, %v1880
    %v1882 = vpop.f32.mrb[0].mxu0
    %v1883 = vadd.f32 %v296, %v1882
    %v1884 = vpop.f32.mrb[0].mxu0
    %v1885 = vadd.f32 %v300, %v1884
    %1886 = vmatprep.mubr.bf16.mxu0 %v456
    %1887 = vmatmul.mubr.bf16.gmra.mrb[0].mxu0 %v455
    %v1888 = vpop.f32.mrb[0].mxu0
    %v1889 = vadd.f32 %v296, %v1888
    %v1890 = vpop.f32.mrb[0].mxu0
    %v1891 = vadd.f32 %v300, %v1890
    %v1892 = vpop.f32.mrb[0].mxu0
    %v1893 = vadd.f32 %v296, %v1892
    %v1894 = vpop.f32.mrb[0].mxu0
    %v1895 = vadd.f32 %v300, %v1894
    %1896 = vmatprep.mubr.bf16.mxu0 %v462
    %1897 = vmatmul.mubr.bf16.gmra.mrb[0].mxu0 %v461
    %v1898 = vpop.f32.mrb[0].mxu0
    %v1899 = vadd.f32 %v296, %v1898
    %v1900 = vpop.f32.mrb[0].mxu0
    %v1901 = vadd.f32 %v300, %v1900
    %v1902 = vpop.f32.mrb[0].mxu0
    %v1903 = vadd.f32 %v296, %v1902
    %v1904 = vpop.f32.mrb[0].mxu0
    %v1905 = vadd.f32 %v300, %v1904
    %1906 = vmatprep.mubr.bf16.mxu0 %v468
    %1907 = vmatmul.mubr.bf16.gmra.mrb[0].mxu0 %v467
    %v1908 = vpop.f32.mrb[0].mxu0
    %v1909 = vadd.f32 %v296, %v1908
    %v1910 = vpop.f32.mrb[0].mxu0
    %v1911 = vadd.f32 %v300, %v1910
    %v1912 = vpop.f32.mrb[0].mxu0
    %v1913 = vadd.f32 %v296, %v1912
    %v1914 = vpop.f32.mrb[0].mxu0
    %v1915 = vadd.f32 %v300, %v1914
    %1916 = vmatprep.mubr.bf16.mxu0 %v474
    %1917 = vmatmul.mubr.bf16.gmra.mrb[0].mxu0 %v473
    %v1918 = vpop.f32.mrb[0].mxu0
    %v1919 = vadd.f32 %v296, %v1918
    %v1920 = vpop.f32.mrb[0].mxu0
    %v1921 = vadd.f32 %v300, %v1920
    %v1922 = vpop.f32.mrb[0].mxu0
    %v1923 = vadd.f32 %v296, %v1922
    %v1924 = vpop.f32.mrb[0].mxu0
    %v1925 = vadd.f32 %v300, %v1924
    %1926 = vmatprep.mubr.bf16.mxu0 %v480
    %1927 = vmatmul.mubr.bf16.gmra.mrb[0].mxu0 %v479
    %v1928 = vpop.f32.mrb[0].mxu0
    %v1929 = vadd.f32 %v296, %v1928
    %v1930 = vpop.f32.mrb[0].mxu0
    %v1931 = vadd.f32 %v300, %v1930
    %v1932 = vpop.f32.mrb[0].mxu0
    %v1933 = vadd.f32 %v296, %v1932
    %v1934 = vpop.f32.mrb[0].mxu0
    %v1935 = vadd.f32 %v300, %v1934
    %1936 = vmatprep.mubr.bf16.mxu0 %v486
    %1937 = vmatmul.mubr.bf16.gmra.mrb[0].mxu0 %v485
    %v1938 = vpop.f32.mrb[0].mxu0
    %v1939 = vadd.f32 %v296, %v1938
    %v1940 = vpop.f32.mrb[0].mxu0
    %v1941 = vadd.f32 %v300, %v1940
    %v1942 = vpop.f32.mrb[0].mxu0
    %v1943 = vadd.f32 %v296, %v1942
    %v1944 = vpop.f32.mrb[0].mxu0
    %v1945 = vadd.f32 %v300, %v1944
    %1946 = vmatprep.mubr.bf16.mxu0 %v492
    %1947 = vmatmul.mubr.bf16.gmra.mrb[0].mxu0 %v491
    %v1948 = vpop.f32.mrb[0].mxu0
    %v1949 = vadd.f32 %v296, %v1948
    %v1950 = vpop.f32.mrb[0].mxu0
    %v1951 = vadd.f32 %v300, %v1950
    %v1952 = vpop.f32.mrb[0].mxu0
    %v1953 = vadd.f32 %v296, %v1952
    %v1954 = vpop.f32.mrb[0].mxu0
    %v1955 = vadd.f32 %v300, %v1954
    %1956 = vdwg.mxu0
    %1957 = vmatprep.subr.bf16.mxu0 %v1188
    %1958 = vmatpush1.bf16.msra.mxu0 %v1187
    %1959 = vmatprep.subr.bf16.mxu0 %v1192
    %1960 = vmatpush1.bf16.msra.mxu0 %v1191
    %1961 = vmatprep.subr.bf16.mxu0 %v1196
    %1962 = vmatpush1.bf16.msra.mxu0 %v1195
    %1963 = vmatprep.subr.bf16.mxu0 %v1200
    %1964 = vmatpush1.bf16.msra.mxu0 %v1199
    %1965 = vmatprep.subr.bf16.mxu0 %v1204
    %1966 = vmatpush1.bf16.msra.mxu0 %v1203
    %1967 = vmatprep.subr.bf16.mxu0 %v1208
    %1968 = vmatpush1.bf16.msra.mxu0 %v1207
    %1969 = vmatprep.subr.bf16.mxu0 %v1212
    %1970 = vmatpush1.bf16.msra.mxu0 %v1211
    %1971 = vmatprep.subr.bf16.mxu0 %v1216
    %1972 = vmatpush1.bf16.msra.mxu0 %v1215
    %1973 = vmatprep.subr.bf16.mxu0 %v1220
    %1974 = vmatpush1.bf16.msra.mxu0 %v1219
    %1975 = vmatprep.subr.bf16.mxu0 %v1224
    %1976 = vmatpush1.bf16.msra.mxu0 %v1223
    %1977 = vmatprep.subr.bf16.mxu0 %v1228
    %1978 = vmatpush1.bf16.msra.mxu0 %v1227
    %1979 = vmatprep.subr.bf16.mxu0 %v1232
    %1980 = vmatpush1.bf16.msra.mxu0 %v1231
    %1981 = vmatprep.subr.bf16.mxu0 %v1236
    %1982 = vmatpush1.bf16.msra.mxu0 %v1235
    %1983 = vmatprep.subr.bf16.mxu0 %v1240
    %1984 = vmatpush1.bf16.msra.mxu0 %v1239
    %1985 = vmatprep.subr.bf16.mxu0 %v1244
    %1986 = vmatpush1.bf16.msra.mxu0 %v1243
    %1987 = vmatprep.subr.bf16.mxu0 %v1248
    %1988 = vmatpush1.bf16.msra.mxu0 %v1247
    %1989 = vmatprep.mubr.bf16.mxu0 %v452
    %1990 = vmatmul.mubr.bf16.gmra.mrb[0].mxu0 %v451
    %v1991 = vpop.f32.mrb[0].mxu0
    %v1992 = vadd.f32 %v1879, %v1991
    %v1993 = vpop.f32.mrb[0].mxu0
    %v1994 = vadd.f32 %v1881, %v1993
    %v1995 = vpop.f32.mrb[0].mxu0
    %v1996 = vadd.f32 %v1883, %v1995
    %v1997 = vpop.f32.mrb[0].mxu0
    %v1998 = vadd.f32 %v1885, %v1997
    %1999 = vmatprep.mubr.bf16.mxu0 %v458
    %2000 = vmatmul.mubr.bf16.gmra.mrb[0].mxu0 %v457
    %v2001 = vpop.f32.mrb[0].mxu0
    %v2002 = vadd.f32 %v1889, %v2001
    %v2003 = vpop.f32.mrb[0].mxu0
    %v2004 = vadd.f32 %v1891, %v2003
    %v2005 = vpop.f32.mrb[0].mxu0
    %v2006 = vadd.f32 %v1893, %v2005
    %v2007 = vpop.f32.mrb[0].mxu0
    %v2008 = vadd.f32 %v1895, %v2007
    %2009 = vmatprep.mubr.bf16.mxu0 %v464
    %2010 = vmatmul.mubr.bf16.gmra.mrb[0].mxu0 %v463
    %v2011 = vpop.f32.mrb[0].mxu0
    %v2012 = vadd.f32 %v1899, %v2011
    %v2013 = vpop.f32.mrb[0].mxu0
    %v2014 = vadd.f32 %v1901, %v2013
    %v2015 = vpop.f32.mrb[0].mxu0
    %v2016 = vadd.f32 %v1903, %v2015
    %v2017 = vpop.f32.mrb[0].mxu0
    %v2018 = vadd.f32 %v1905, %v2017
    %2019 = vmatprep.mubr.bf16.mxu0 %v470
    %2020 = vmatmul.mubr.bf16.gmra.mrb[0].mxu0 %v469
    %v2021 = vpop.f32.mrb[0].mxu0
    %v2022 = vadd.f32 %v1909, %v2021
    %v2023 = vpop.f32.mrb[0].mxu0
    %v2024 = vadd.f32 %v1911, %v2023
    %v2025 = vpop.f32.mrb[0].mxu0
    %v2026 = vadd.f32 %v1913, %v2025
    %v2027 = vpop.f32.mrb[0].mxu0
    %v2028 = vadd.f32 %v1915, %v2027
    %2029 = vmatprep.mubr.bf16.mxu0 %v476
    %2030 = vmatmul.mubr.bf16.gmra.mrb[0].mxu0 %v475
    %v2031 = vpop.f32.mrb[0].mxu0
    %v2032 = vadd.f32 %v1919, %v2031
    %v2033 = vpop.f32.mrb[0].mxu0
    %v2034 = vadd.f32 %v1921, %v2033
    %v2035 = vpop.f32.mrb[0].mxu0
    %v2036 = vadd.f32 %v1923, %v2035
    %v2037 = vpop.f32.mrb[0].mxu0
    %v2038 = vadd.f32 %v1925, %v2037
    %2039 = vmatprep.mubr.bf16.mxu0 %v482
    %2040 = vmatmul.mubr.bf16.gmra.mrb[0].mxu0 %v481
    %v2041 = vpop.f32.mrb[0].mxu0
    %v2042 = vadd.f32 %v1929, %v2041
    %v2043 = vpop.f32.mrb[0].mxu0
    %v2044 = vadd.f32 %v1931, %v2043
    %v2045 = vpop.f32.mrb[0].mxu0
    %v2046 = vadd.f32 %v1933, %v2045
    %v2047 = vpop.f32.mrb[0].mxu0
    %v2048 = vadd.f32 %v1935, %v2047
    %2049 = vmatprep.mubr.bf16.mxu0 %v488
    %2050 = vmatmul.mubr.bf16.gmra.mrb[0].mxu0 %v487
    %v2051 = vpop.f32.mrb[0].mxu0
    %v2052 = vadd.f32 %v1939, %v2051
    %v2053 = vpop.f32.mrb[0].mxu0
    %v2054 = vadd.f32 %v1941, %v2053
    %v2055 = vpop.f32.mrb[0].mxu0
    %v2056 = vadd.f32 %v1943, %v2055
    %v2057 = vpop.f32.mrb[0].mxu0
    %v2058 = vadd.f32 %v1945, %v2057
    %2059 = vmatprep.mubr.bf16.mxu0 %v494
    %2060 = vmatmul.mubr.bf16.gmra.mrb[0].mxu0 %v493
    %v2061 = vpop.f32.mrb[0].mxu0
    %v2062 = vadd.f32 %v1949, %v2061
    %v2063 = vpop.f32.mrb[0].mxu0
    %v2064 = vadd.f32 %v1951, %v2063
    %v2065 = vpop.f32.mrb[0].mxu0
    %v2066 = vadd.f32 %v1953, %v2065
    %v2067 = vpop.f32.mrb[0].mxu0
    %v2068 = vadd.f32 %v1955, %v2067
    %2069 = vdwg.mxu0
    %2070 = vmatprep.subr.bf16.mxu0 %v1252
    %2071 = vmatpush1.bf16.msra.mxu0 %v1251
    %2072 = vmatprep.subr.bf16.mxu0 %v1256
    %2073 = vmatpush1.bf16.msra.mxu0 %v1255
    %2074 = vmatprep.subr.bf16.mxu0 %v1260
    %2075 = vmatpush1.bf16.msra.mxu0 %v1259
    %2076 = vmatprep.subr.bf16.mxu0 %v1264
    %2077 = vmatpush1.bf16.msra.mxu0 %v1263
    %2078 = vmatprep.subr.bf16.mxu0 %v1268
    %2079 = vmatpush1.bf16.msra.mxu0 %v1267
    %2080 = vmatprep.subr.bf16.mxu0 %v1272
    %2081 = vmatpush1.bf16.msra.mxu0 %v1271
    %2082 = vmatprep.subr.bf16.mxu0 %v1276
    %2083 = vmatpush1.bf16.msra.mxu0 %v1275
    %2084 = vmatprep.subr.bf16.mxu0 %v1280
    %2085 = vmatpush1.bf16.msra.mxu0 %v1279
    %2086 = vmatprep.subr.bf16.mxu0 %v1284
    %2087 = vmatpush1.bf16.msra.mxu0 %v1283
    %2088 = vmatprep.subr.bf16.mxu0 %v1288
    %2089 = vmatpush1.bf16.msra.mxu0 %v1287
    %2090 = vmatprep.subr.bf16.mxu0 %v1292
    %2091 = vmatpush1.bf16.msra.mxu0 %v1291
    %2092 = vmatprep.subr.bf16.mxu0 %v1296
    %2093 = vmatpush1.bf16.msra.mxu0 %v1295
    %2094 = vmatprep.subr.bf16.mxu0 %v1300
    %2095 = vmatpush1.bf16.msra.mxu0 %v1299
    %2096 = vmatprep.subr.bf16.mxu0 %v1304
    %2097 = vmatpush1.bf16.msra.mxu0 %v1303
    %2098 = vmatprep.subr.bf16.mxu0 %v1308
    %2099 = vmatpush1.bf16.msra.mxu0 %v1307
    %2100 = vmatprep.subr.bf16.mxu0 %v1312
    %2101 = vmatpush1.bf16.msra.mxu0 %v1311
    %2102 = vmatprep.mubr.bf16.mxu0 %v454
    %2103 = vmatmul.mubr.bf16.gmra.mrb[0].mxu0 %v453
    %v2104 = vpop.f32.mrb[0].mxu0
    %v2105 = vadd.f32 %v1992, %v2104
    %v2106 = vpop.f32.mrb[0].mxu0
    %v2107 = vadd.f32 %v1994, %v2106
    %v2108 = vpop.f32.mrb[0].mxu0
    %v2109 = vadd.f32 %v1996, %v2108
    %v2110 = vpop.f32.mrb[0].mxu0
    %v2111 = vadd.f32 %v1998, %v2110
    %2112 = vmatprep.mubr.bf16.mxu0 %v460
    %2113 = vmatmul.mubr.bf16.gmra.mrb[0].mxu0 %v459
    %v2114 = vpop.f32.mrb[0].mxu0
    %v2115 = vadd.f32 %v2002, %v2114
    %v2116 = vpop.f32.mrb[0].mxu0
    %v2117 = vadd.f32 %v2004, %v2116
    %v2118 = vpop.f32.mrb[0].mxu0
    %v2119 = vadd.f32 %v2006, %v2118
    %v2120 = vpop.f32.mrb[0].mxu0
    %v2121 = vadd.f32 %v2008, %v2120
    %2122 = vmatprep.mubr.bf16.mxu0 %v466
    %2123 = vmatmul.mubr.bf16.gmra.mrb[0].mxu0 %v465
    %v2124 = vpop.f32.mrb[0].mxu0
    %v2125 = vadd.f32 %v2012, %v2124
    %v2126 = vpop.f32.mrb[0].mxu0
    %v2127 = vadd.f32 %v2014, %v2126
    %v2128 = vpop.f32.mrb[0].mxu0
    %v2129 = vadd.f32 %v2016, %v2128
    %v2130 = vpop.f32.mrb[0].mxu0
    %v2131 = vadd.f32 %v2018, %v2130
    %2132 = vmatprep.mubr.bf16.mxu0 %v472
    %2133 = vmatmul.mubr.bf16.gmra.mrb[0].mxu0 %v471
    %v2134 = vpop.f32.mrb[0].mxu0
    %v2135 = vadd.f32 %v2022, %v2134
    %v2136 = vpop.f32.mrb[0].mxu0
    %v2137 = vadd.f32 %v2024, %v2136
    %v2138 = vpop.f32.mrb[0].mxu0
    %v2139 = vadd.f32 %v2026, %v2138
    %v2140 = vpop.f32.mrb[0].mxu0
    %v2141 = vadd.f32 %v2028, %v2140
    %2142 = vmatprep.mubr.bf16.mxu0 %v478
    %2143 = vmatmul.mubr.bf16.gmra.mrb[0].mxu0 %v477
    %v2144 = vpop.f32.mrb[0].mxu0
    %v2145 = vadd.f32 %v2032, %v2144
    %v2146 = vpop.f32.mrb[0].mxu0
    %v2147 = vadd.f32 %v2034, %v2146
    %v2148 = vpop.f32.mrb[0].mxu0
    %v2149 = vadd.f32 %v2036, %v2148
    %v2150 = vpop.f32.mrb[0].mxu0
    %v2151 = vadd.f32 %v2038, %v2150
    %2152 = vmatprep.mubr.bf16.mxu0 %v484
    %2153 = vmatmul.mubr.bf16.gmra.mrb[0].mxu0 %v483
    %v2154 = vpop.f32.mrb[0].mxu0
    %v2155 = vadd.f32 %v2042, %v2154
    %v2156 = vpop.f32.mrb[0].mxu0
    %v2157 = vadd.f32 %v2044, %v2156
    %v2158 = vpop.f32.mrb[0].mxu0
    %v2159 = vadd.f32 %v2046, %v2158
    %v2160 = vpop.f32.mrb[0].mxu0
    %v2161 = vadd.f32 %v2048, %v2160
    %2162 = vmatprep.mubr.bf16.mxu0 %v490
    %2163 = vmatmul.mubr.bf16.gmra.mrb[0].mxu0 %v489
    %v2164 = vpop.f32.mrb[0].mxu0
    %v2165 = vadd.f32 %v2052, %v2164
    %v2166 = vpop.f32.mrb[0].mxu0
    %v2167 = vadd.f32 %v2054, %v2166
    %v2168 = vpop.f32.mrb[0].mxu0
    %v2169 = vadd.f32 %v2056, %v2168
    %v2170 = vpop.f32.mrb[0].mxu0
    %v2171 = vadd.f32 %v2058, %v2170
    %2172 = vmatprep.mubr.bf16.mxu0 %v496
    %2173 = vmatmul.mubr.bf16.gmra.mrb[0].mxu0 %v495
    %v2174 = vpop.f32.mrb[0].mxu0
    %v2175 = vadd.f32 %v2062, %v2174
    %v2176 = vpop.f32.mrb[0].mxu0
    %v2177 = vadd.f32 %v2064, %v2176
    %v2178 = vpop.f32.mrb[0].mxu0
    %v2179 = vadd.f32 %v2066, %v2178
    %v2180 = vpop.f32.mrb[0].mxu0
    %v2181 = vadd.f32 %v2068, %v2180
    %2182 = vdwg.mxu0
    %v2183 = vmax.f32 %v1766, 0.0
    %v2184 = vmax.f32 %v1768, 0.0
    %v2185 = vmax.f32 %v2105, 0.0
    %v2186 = vmax.f32 %v2107, 0.0
    %v2187 = vmax.f32 %v1770, 0.0
    %v2188 = vmax.f32 %v1772, 0.0
    %v2189 = vmax.f32 %v2109, 0.0
    %v2190 = vmax.f32 %v2111, 0.0
    %v2191 = vmax.f32 %v1776, 0.0
    %v2192 = vmax.f32 %v1778, 0.0
    %v2193 = vmax.f32 %v2115, 0.0
    %v2194 = vmax.f32 %v2117, 0.0
    %v2195 = vmax.f32 %v1780, 0.0
    %v2196 = vmax.f32 %v1782, 0.0
    %v2197 = vmax.f32 %v2119, 0.0
    %v2198 = vmax.f32 %v2121, 0.0
    %v2199 = vmax.f32 %v1786, 0.0
    %v2200 = vmax.f32 %v1788, 0.0
    %v2201 = vmax.f32 %v2125, 0.0
    %v2202 = vmax.f32 %v2127, 0.0
    %v2203 = vmax.f32 %v1790, 0.0
    %v2204 = vmax.f32 %v1792, 0.0
    %v2205 = vmax.f32 %v2129, 0.0
    %v2206 = vmax.f32 %v2131, 0.0
    %v2207 = vmax.f32 %v1796, 0.0
    %v2208 = vmax.f32 %v1798, 0.0
    %v2209 = vmax.f32 %v2135, 0.0
    %v2210 = vmax.f32 %v2137, 0.0
    %v2211 = vmax.f32 %v1800, 0.0
    %v2212 = vmax.f32 %v1802, 0.0
    %v2213 = vmax.f32 %v2139, 0.0
    %v2214 = vmax.f32 %v2141, 0.0
    %v2215 = vmax.f32 %v1806, 0.0
    %v2216 = vmax.f32 %v1808, 0.0
    %v2217 = vmax.f32 %v2145, 0.0
    %v2218 = vmax.f32 %v2147, 0.0
    %v2219 = vmax.f32 %v1810, 0.0
    %v2220 = vmax.f32 %v1812, 0.0
    %v2221 = vmax.f32 %v2149, 0.0
    %v2222 = vmax.f32 %v2151, 0.0
    %v2223 = vmax.f32 %v1816, 0.0
    %v2224 = vmax.f32 %v1818, 0.0
    %v2225 = vmax.f32 %v2155, 0.0
    %v2226 = vmax.f32 %v2157, 0.0
    %v2227 = vmax.f32 %v1820, 0.0
    %v2228 = vmax.f32 %v1822, 0.0
    %v2229 = vmax.f32 %v2159, 0.0
    %v2230 = vmax.f32 %v2161, 0.0
    %v2231 = vmax.f32 %v1826, 0.0
    %v2232 = vmax.f32 %v1828, 0.0
    %v2233 = vmax.f32 %v2165, 0.0
    %v2234 = vmax.f32 %v2167, 0.0
    %v2235 = vmax.f32 %v1830, 0.0
    %v2236 = vmax.f32 %v1832, 0.0
    %v2237 = vmax.f32 %v2169, 0.0
    %v2238 = vmax.f32 %v2171, 0.0
    %v2239 = vmax.f32 %v1836, 0.0
    %v2240 = vmax.f32 %v1838, 0.0
    %v2241 = vmax.f32 %v2175, 0.0
    %v2242 = vmax.f32 %v2177, 0.0
    %v2243 = vmax.f32 %v1840, 0.0
    %v2244 = vmax.f32 %v1842, 0.0
    %v2245 = vmax.f32 %v2179, 0.0
    %v2246 = vmax.f32 %v2181, 0.0
    %2247 = vst [vmem:[#allocation7] sm:$0xff] %v2183
    %2248 = vst [vmem:[#allocation7 + $0x8] sm:$0xff] %v2184
    %2249 = vst [vmem:[#allocation7 + $0x10] sm:$0xff] %v2185
    %2250 = vst [vmem:[#allocation7 + $0x18] sm:$0xff] %v2186
    %2251 = vst [vmem:[#allocation7 + $0x20] sm:$0xff] %v2187
    %2252 = vst [vmem:[#allocation7 + $0x28] sm:$0xff] %v2188
    %2253 = vst [vmem:[#allocation7 + $0x30] sm:$0xff] %v2189
    %2254 = vst [vmem:[#allocation7 + $0x38] sm:$0xff] %v2190
    %2255 = vst [vmem:[#allocation7 + $0x40] sm:$0xff] %v2191
    %2256 = vst [vmem:[#allocation7 + $0x48] sm:$0xff] %v2192
    %2257 = vst [vmem:[#allocation7 + $0x50] sm:$0xff] %v2193
    %2258 = vst [vmem:[#allocation7 + $0x58] sm:$0xff] %v2194
    %2259 = vst [vmem:[#allocation7 + $0x60] sm:$0xff] %v2195
    %2260 = vst [vmem:[#allocation7 + $0x68] sm:$0xff] %v2196
    %2261 = vst [vmem:[#allocation7 + $0x70] sm:$0xff] %v2197
    %2262 = vst [vmem:[#allocation7 + $0x78] sm:$0xff] %v2198
    %2263 = vst [vmem:[#allocation7 + $0x80] sm:$0xff] %v2199
    %2264 = vst [vmem:[#allocation7 + $0x88] sm:$0xff] %v2200
    %2265 = vst [vmem:[#allocation7 + $0x90] sm:$0xff] %v2201
    %2266 = vst [vmem:[#allocation7 + $0x98] sm:$0xff] %v2202
    %2267 = vst [vmem:[#allocation7 + $0xa0] sm:$0xff] %v2203
    %2268 = vst [vmem:[#allocation7 + $0xa8] sm:$0xff] %v2204
    %2269 = vst [vmem:[#allocation7 + $0xb0] sm:$0xff] %v2205
    %2270 = vst [vmem:[#allocation7 + $0xb8] sm:$0xff] %v2206
    %2271 = vst [vmem:[#allocation7 + $0xc0] sm:$0xff] %v2207
    %2272 = vst [vmem:[#allocation7 + $0xc8] sm:$0xff] %v2208
    %2273 = vst [vmem:[#allocation7 + $0xd0] sm:$0xff] %v2209
    %2274 = vst [vmem:[#allocation7 + $0xd8] sm:$0xff] %v2210
    %2275 = vst [vmem:[#allocation7 + $0xe0] sm:$0xff] %v2211
    %2276 = vst [vmem:[#allocation7 + $0xe8] sm:$0xff] %v2212
    %2277 = vst [vmem:[#allocation7 + $0xf0] sm:$0xff] %v2213
    %2278 = vst [vmem:[#allocation7 + $0xf8] sm:$0xff] %v2214
    %2279 = vst [vmem:[#allocation7 + $0x100] sm:$0xff] %v2215
    %2280 = vst [vmem:[#allocation7 + $0x108] sm:$0xff] %v2216
    %2281 = vst [vmem:[#allocation7 + $0x110] sm:$0xff] %v2217
    %2282 = vst [vmem:[#allocation7 + $0x118] sm:$0xff] %v2218
    %2283 = vst [vmem:[#allocation7 + $0x120] sm:$0xff] %v2219
    %2284 = vst [vmem:[#allocation7 + $0x128] sm:$0xff] %v2220
    %2285 = vst [vmem:[#allocation7 + $0x130] sm:$0xff] %v2221
    %2286 = vst [vmem:[#allocation7 + $0x138] sm:$0xff] %v2222
    %2287 = vst [vmem:[#allocation7 + $0x140] sm:$0xff] %v2223
    %2288 = vst [vmem:[#allocation7 + $0x148] sm:$0xff] %v2224
    %2289 = vst [vmem:[#allocation7 + $0x150] sm:$0xff] %v2225
    %2290 = vst [vmem:[#allocation7 + $0x158] sm:$0xff] %v2226
    %2291 = vst [vmem:[#allocation7 + $0x160] sm:$0xff] %v2227
    %2292 = vst [vmem:[#allocation7 + $0x168] sm:$0xff] %v2228
    %2293 = vst [vmem:[#allocation7 + $0x170] sm:$0xff] %v2229
    %2294 = vst [vmem:[#allocation7 + $0x178] sm:$0xff] %v2230
    %2295 = vst [vmem:[#allocation7 + $0x180] sm:$0xff] %v2231
    %2296 = vst [vmem:[#allocation7 + $0x188] sm:$0xff] %v2232
    %2297 = vst [vmem:[#allocation7 + $0x190] sm:$0xff] %v2233
    %2298 = vst [vmem:[#allocation7 + $0x198] sm:$0xff] %v2234
    %2299 = vst [vmem:[#allocation7 + $0x1a0] sm:$0xff] %v2235
    %2300 = vst [vmem:[#allocation7 + $0x1a8] sm:$0xff] %v2236
    %2301 = vst [vmem:[#allocation7 + $0x1b0] sm:$0xff] %v2237
    %2302 = vst [vmem:[#allocation7 + $0x1b8] sm:$0xff] %v2238
    %2303 = vst [vmem:[#allocation7 + $0x1c0] sm:$0xff] %v2239
    %2304 = vst [vmem:[#allocation7 + $0x1c8] sm:$0xff] %v2240
    %2305 = vst [vmem:[#allocation7 + $0x1d0] sm:$0xff] %v2241
    %2306 = vst [vmem:[#allocation7 + $0x1d8] sm:$0xff] %v2242
    %2307 = vst [vmem:[#allocation7 + $0x1e0] sm:$0xff] %v2243
    %2308 = vst [vmem:[#allocation7 + $0x1e8] sm:$0xff] %v2244
    %2309 = vst [vmem:[#allocation7 + $0x1f0] sm:$0xff] %v2245
    %2310 = vst [vmem:[#allocation7 + $0x1f8] sm:$0xff] %v2246
    // Predicated region
    $region22: #{tpu_custom_call.1} parent=1 // pred_check
      _
    $region23: #{tpu_custom_call.1} parent=1 // pred_check_branch
      %2312 = sbr.rel (0) target = $region25
    $region24: #{tpu_custom_call.1} parent=1 // pred_region
      %s2314 = ssub.s32 8192, 8192
      %2315 = vsyncadd [#allocation4], %s2314
      %s2316 = sshll.u32 [#allocation7], 4
      %s2317 = int_to_ptr.vmem [resolvable:$true] %s2316
      %2322 = dma.vmem_to_hbm [thread:$0]  %s2317, 8192, %s3, [#allocation4], 512, 512, 32
    $region25: #{tpu_custom_call.1} parent=1 // pred_fallthru
      _
    // Predicated region
    $region26: #{tpu_custom_call.1} parent=1 // pred_check
      _
    $region27: #{tpu_custom_call.1} parent=1 // pred_check_branch
      %2324 = sbr.rel (0) target = $region29
    $region28: #{tpu_custom_call.1} parent=1 // pred_region
      %2325 = dma.done [#allocation4], 8192
    $region29: #{tpu_custom_call.1} parent=1 // pred_fallthru
      _
    %2326 = vsyncpa [#allocation3], 1
    %2327 = vsyncpa [#allocation6], 1
    %2328 = vsyncpa [#allocation4], 1

</llo_original>
